<compile_context>
chip_gen: v6e
topology: v6e:2x2x1
jax: 0.10.0
libtpu: 0.0.40
codegen_flags: <defaults>
</compile_context>

<pallas_src>
import functools

import jax
import jax.numpy as jnp
from jax import lax
from jax.experimental import pallas as pl
from jax.experimental.pallas import tpu as pltpu

# ---------------- model hyper-params (small, synthetic) ----------------
VOCAB_SIZE    = 100
EMBEDDING_DIM = 32
N_FILTERS     = 8
FILTER_SIZES  = (2, 3, 4)
OUTPUT_DIM    = 4
PAD_IDX       = 0

BATCH   = 32          # 32 sequences -> 256 token rows total (fills MXU rows)
SEQ_LEN = 8

MAX_FS  = max(FILTER_SIZES)            # 4
N_PACK  = 128                          # lane-dense feature / class width
V_PAD   = 128                          # vocab padded (multiple of 8, aligned K dim)
BLOCK_B = 16                           # sequences per grid block (multiple of 8)
BLOCK_R = BLOCK_B * SEQ_LEN            # 128 token rows per block (multiple of 8)
NEG_INF = -1e30

assert len(FILTER_SIZES) * N_FILTERS <= N_PACK and OUTPUT_DIM <= N_PACK
assert VOCAB_SIZE <= V_PAD and BLOCK_B % 8 == 0 and BLOCK_R % 8 == 0
assert MAX_FS * EMBEDDING_DIM <= N_PACK


# ---------------- kernel ----------------
def cnn_kernel(ids_ref, table_ref, wconv_ref, wfc_ref, b_ref, mask_ref, out_ref,
               *, block_b, seq):
    """One grid step = BLOCK_B sequences; everything resident in VMEM (< 0.5 MiB).

    ids_ref   : [block_b*seq, 1]  int32  token ids (pre-flattened)
    table_ref : [V_PAD, E]        f32    embedding table (pad rows / pad_idx row zero)
    wconv_ref : [MAX_FS, E, 128]  f32    per-tap im2col conv weights (zero-padded)
    wfc_ref   : [128, 128]        f32    fc weight, zero-padded
    b_ref     : [2, 128]          f32    [0]=conv bias (24 real), [1]=fc bias (pad=-1e30)
    mask_ref  : [block_b*seq,128] f32    1.0 where (position, filter) is valid
    out_ref   : [block_b, 128]    f32    softmax probs, lanes >= OUTPUT_DIM are 0
    """
    rows = block_b * seq

    # 1) fused embedding gather: one-hot(ids) @ table on the MXU (K = V_PAD = 128).
    ids = ids_ref[...]                                               # [rows, 1]
    vocab_iota = lax.broadcasted_iota(jnp.int32, (rows, table_ref.shape[0]), 1)
    onehot = (ids == vocab_iota).astype(jnp.float32)                 # [rows, V_PAD]
    emb = jnp.dot(onehot, table_ref[...],
                  preferred_element_type=jnp.float32)                # [rows, E]

    # 2+3) im2col + all conv banks: accumulate MAX_FS K=32 matmuls over sublane-rolled
    #      views of the flat activations (rolls on the XLU; no concat/reshape copies).
    #      Rows that wrap to the next sequence only feed masked positions.
    conv = jnp.dot(emb, wconv_ref[0], preferred_element_type=jnp.float32)
    for k in range(1, MAX_FS):
        shifted = pltpu.roll(emb, shift=rows - k, axis=0)            # row t <- emb[t+k]
        conv = conv + jnp.dot(shifted, wconv_ref[k],
                              preferred_element_type=jnp.float32)    # [rows, 128]

    b_all = b_ref[...]                                               # [2, 128]
    conv = jnp.maximum(conv + b_all[0:1, :], 0.0)                    # bias + ReLU
    conv = conv * mask_ref[...]                                      # exact: conv >= 0

    # 4) max-over-time per sequence.
    pooled = jnp.max(conv.reshape(block_b, seq, N_PACK), axis=1)     # [block_b, 128]

    # TODO(synk): dropout is identity here (inference / eval mode).

    # 5) fc + softmax over real class lanes (pad lanes biased to -1e30 -> prob 0).
    logits = jnp.dot(pooled, wfc_ref[...],
                     preferred_element_type=jnp.float32) + b_all[1:2, :]
    m = jnp.max(logits, axis=-1, keepdims=True)
    ex = jnp.exp(logits - m)
    denom = jnp.sum(ex, axis=-1, keepdims=True)
    out_ref[...] = ex * pl.reciprocal(denom, approx=True)


# ---------------- parameter init / packing ----------------
def init_params(key):
    keys = jax.random.split(key, 2 + 2 * len(FILTER_SIZES) + 2)
    ki = iter(keys)

    emb_table = 0.1 * jax.random.normal(next(ki), (VOCAB_SIZE, EMBEDDING_DIM),
                                        dtype=jnp.float32)
    emb_table = emb_table.at[PAD_IDX].set(0.0)           # padding_idx row is zero

    conv_ws, conv_bs = [], []
    for fs in FILTER_SIZES:
        conv_ws.append(0.1 * jax.random.normal(
            next(ki), (N_FILTERS, fs, EMBEDDING_DIM), dtype=jnp.float32))
        conv_bs.append(0.1 * jax.random.normal(
            next(ki), (1, N_FILTERS), dtype=jnp.float32))

    fc_w = 0.1 * jax.random.normal(
        next(ki), (OUTPUT_DIM, len(FILTER_SIZES) * N_FILTERS), dtype=jnp.float32)
    fc_b = 0.1 * jax.random.normal(next(ki), (1, OUTPUT_DIM), dtype=jnp.float32)

    return dict(embedding=emb_table, conv_ws=conv_ws, conv_bs=conv_bs,
                fc_w=fc_w, fc_b=fc_b)


def prepare_params(params):
    """One-time layout plumbing: pad / pre-transpose everything outside the kernel."""
    F, E = N_FILTERS, EMBEDDING_DIM

    # Embedding table padded to V_PAD rows (aligned contraction dim).
    table = jnp.zeros((V_PAD, E), jnp.float32).at[:VOCAB_SIZE].set(params["embedding"])

    # Per-tap conv weights: w_conv[k, e, j*F + f] = conv_ws[j][f, k, e] (zero if k >= fs_j).
    w_conv = jnp.zeros((MAX_FS, E, N_PACK), jnp.float32)
    b_conv = jnp.zeros((N_PACK,), jnp.float32)
    for j, fs in enumerate(FILTER_SIZES):
        wj = params["conv_ws"][j]                               # [F, fs, E]
        for k in range(fs):
            w_conv = w_conv.at[k, :, j * F:(j + 1) * F].set(wj[:, k, :].T)
        b_conv = b_conv.at[j * F:(j + 1) * F].set(params["conv_bs"][j].reshape(F))

    # fc: zero-padded to 128x128; pad class lanes get -1e30 bias -> softmax prob 0.
    w_fc = jnp.zeros((N_PACK, N_PACK), jnp.float32)
    w_fc = w_fc.at[:len(FILTER_SIZES) * F, :OUTPUT_DIM].set(params["fc_w"].T)
    b_fc = jnp.full((N_PACK,), NEG_INF, jnp.float32)
    b_fc = b_fc.at[:OUTPUT_DIM].set(params["fc_b"].reshape(OUTPUT_DIM))

    # Precomputed validity mask (hoisted out of the kernel): position s is valid for
    # filter column c iff s <= SEQ_LEN - fs(c).  Also zeroes rolled wrap rows.
    col = jnp.arange(N_PACK)
    fs_of_c = jnp.where(col < F, FILTER_SIZES[0],
                        jnp.where(col < 2 * F, FILTER_SIZES[1], FILTER_SIZES[2]))
    pos = jnp.arange(SEQ_LEN)
    valid = (pos[:, None] <= (SEQ_LEN - fs_of_c)[None, :]).astype(jnp.float32)  # [S, 128]
    mask = jnp.tile(valid, (BLOCK_B, 1))                                         # [BLOCK_R, 128]

    return dict(table=table,                              # [V_PAD, E]
                w_conv=w_conv,                            # [MAX_FS, E, 128]
                w_fc=w_fc,                                # [128, 128]
                biases=jnp.stack([b_conv, b_fc], axis=0), # [2, 128]
                mask=mask)                                # [BLOCK_R, 128]


# ---------------- forward wrapper ----------------
@jax.jit
def cnn_forward(text, packed):
    B, S = text.shape
    assert S == SEQ_LEN and B % BLOCK_B == 0
    ids = text.reshape(B * S, 1).astype(jnp.int32)
    n_blocks = B // BLOCK_B

    kernel = functools.partial(cnn_kernel, block_b=BLOCK_B, seq=S)

    rows = B * S
    flops = (2 * rows * V_PAD * EMBEDDING_DIM
             + 2 * rows * MAX_FS * EMBEDDING_DIM * N_PACK
             + 2 * B * N_PACK * N_PACK)
    bytes_acc = 4 * (ids.size + packed["table"].size + packed["w_conv"].size
                     + packed["w_fc"].size + packed["biases"].size
                     + packed["mask"].size + B * N_PACK)

    probs_padded = pl.pallas_call(
        kernel,
        out_shape=jax.ShapeDtypeStruct((B, N_PACK), jnp.float32),
        grid=(n_blocks,),
        in_specs=[
            pl.BlockSpec((BLOCK_R, 1), lambda i: (i, 0)),                       # ids
            pl.BlockSpec((V_PAD, EMBEDDING_DIM), lambda i: (0, 0)),             # table
            pl.BlockSpec((MAX_FS, EMBEDDING_DIM, N_PACK), lambda i: (0, 0, 0)), # w_conv
            pl.BlockSpec((N_PACK, N_PACK), lambda i: (0, 0)),                   # w_fc
            pl.BlockSpec((2, N_PACK), lambda i: (0, 0)),                        # biases
            pl.BlockSpec((BLOCK_R, N_PACK), lambda i: (0, 0)),                  # mask
        ],
        out_specs=pl.BlockSpec((BLOCK_B, N_PACK), lambda i: (i, 0)),
        cost_estimate=pl.CostEstimate(flops=flops,
                                      transcendentals=B * N_PACK + B,
                                      bytes_accessed=bytes_acc),
        compiler_params=pltpu.CompilerParams(
            dimension_semantics=("parallel",),
            vmem_limit_bytes=4 * 1024 * 1024),
    )(ids, packed["table"], packed["w_conv"], packed["w_fc"],
      packed["biases"], packed["mask"])

    return probs_padded[:, :OUTPUT_DIM]


# ---------------- pure-JAX reference (for correctness check) ----------------
def cnn_reference(text, params):
    emb = jnp.take(params["embedding"], text, axis=0)            # [B, S, E]
    B = text.shape[0]
    pooled = []
    for w, b in zip(params["conv_ws"], params["conv_bs"]):
        F_, fs, _ = w.shape
        L = SEQ_LEN - fs + 1
        acc = jnp.zeros((B, L, F_), jnp.float32)
        for k in range(fs):
            acc = acc + jnp.einsum('ble,fe->blf', emb[:, k:k + L, :], w[:, k, :])
        acc = jax.nn.relu(acc + b.reshape(1, 1, F_))
        pooled.append(jnp.max(acc, axis=1))
    cat = jnp.concatenate(pooled, axis=1)
    logits = cat @ params["fc_w"].T + params["fc_b"]
    return jax.nn.softmax(logits, axis=-1)


if __name__ == "__main__":
    key = jax.random.PRNGKey(0)
    pkey, tkey = jax.random.split(key)
    params = init_params(pkey)
    packed = prepare_params(params)

    text = jax.random.randint(tkey, (BATCH, SEQ_LEN), 0, VOCAB_SIZE, dtype=jnp.int32)

    out = cnn_forward(text, packed)
    jax.block_until_ready(out)

    assert out.shape == (BATCH, OUTPUT_DIM)
    # probabilities sum to ~1 per row (approx-reciprocal softmax denominator)
    assert jnp.allclose(jnp.sum(out, axis=-1), 1.0, atol=5e-3)
    # matches the straightforward JAX reference of the PyTorch module
    ref = cnn_reference(text, params)
    assert jnp.allclose(out, ref, atol=2e-3, rtol=2e-3)
    print("KERNEL_OK")
</pallas_src>

<mosaic_0001>
module attributes {stable_mosaic.version = 11 : i64} {
  func.func @cnn_kernel(%arg0: i32, %arg1: memref<128x1xi32, #tpu.memory_space<vmem>>, %arg2: memref<128x32xf32, #tpu.memory_space<vmem>>, %arg3: memref<4x32x128xf32, #tpu.memory_space<vmem>>, %arg4: memref<128x128xf32, #tpu.memory_space<vmem>>, %arg5: memref<2x128xf32, #tpu.memory_space<vmem>>, %arg6: memref<128x128xf32, #tpu.memory_space<vmem>>, %arg7: memref<16x128xf32, #tpu.memory_space<vmem>>) attributes {dimension_semantics = [#tpu.dimension_semantics<parallel>], iteration_bounds = array<i64: 2>, scalar_prefetch = 0 : i64, scratch_operands = 0 : i64, tpu.core_type = #tpu.core_type<tc>, window_params = [{transform_indices = @transform_0, window_bounds = array<i64: 128, 1>}, {pipeline_mode = #tpu.pipeline_mode<synchronous>, transform_indices = @transform_1, window_bounds = array<i64: 128, 32>}, {pipeline_mode = #tpu.pipeline_mode<synchronous>, transform_indices = @transform_2, window_bounds = array<i64: 4, 32, 128>}, {pipeline_mode = #tpu.pipeline_mode<synchronous>, transform_indices = @transform_3, window_bounds = array<i64: 128, 128>}, {pipeline_mode = #tpu.pipeline_mode<synchronous>, transform_indices = @transform_4, window_bounds = array<i64: 2, 128>}, {pipeline_mode = #tpu.pipeline_mode<synchronous>, transform_indices = @transform_5, window_bounds = array<i64: 128, 128>}, {transform_indices = @transform_6, window_bounds = array<i64: 16, 128>}]} {
    %c0 = arith.constant 0 : index
    %c0_0 = arith.constant 0 : index
    %0 = vector.load %arg1[%c0, %c0_0] : memref<128x1xi32, #tpu.memory_space<vmem>>, vector<128x1xi32>
    %1 = tpu.iota {dimensions = array<i32: 1>} : vector<128x128xi32>
    %2 = vector.broadcast %0 : vector<128x1xi32> to vector<128x128xi32>
    %3 = arith.cmpi eq, %2, %1 : vector<128x128xi32>
    %4 = arith.extui %3 : vector<128x128xi1> to vector<128x128xi32>
    %5 = arith.sitofp %4 : vector<128x128xi32> to vector<128x128xf32>
    %c0_1 = arith.constant 0 : index
    %c0_2 = arith.constant 0 : index
    %6 = vector.load %arg2[%c0_1, %c0_2] : memref<128x32xf32, #tpu.memory_space<vmem>>, vector<128x32xf32>
    %cst = arith.constant dense<0.000000e+00> : vector<128x32xf32>
    %7 = tpu.matmul %5, %6, %cst {dimension_numbers = #tpu.dot_dimension_numbers<[1], [0], [0], [1], [0, 0, 1, 1], [], []>} : vector<128x128xf32>, vector<128x32xf32>, vector<128x32xf32> -> vector<128x32xf32>
    %c0_3 = arith.constant 0 : index
    %c0_4 = arith.constant 0 : index
    %c0_5 = arith.constant 0 : index
    %8 = vector.load %arg3[%c0_3, %c0_4, %c0_5] : memref<4x32x128xf32, #tpu.memory_space<vmem>>, vector<1x32x128xf32>
    %9 = vector.shape_cast %8 : vector<1x32x128xf32> to vector<32x128xf32>
    %cst_6 = arith.constant dense<0.000000e+00> : vector<128x128xf32>
    %10 = tpu.matmul %7, %9, %cst_6 {dimension_numbers = #tpu.dot_dimension_numbers<[1], [0], [0], [1], [0, 0, 1, 1], [], []>} : vector<128x32xf32>, vector<32x128xf32>, vector<128x128xf32> -> vector<128x128xf32>
    %c127_i32 = arith.constant 127 : i32
    %11 = tpu.dynamic_rotate %7 by %c127_i32 dim 0 : vector<128x32xf32>, i32 -> vector<128x32xf32>
    %c1 = arith.constant 1 : index
    %c0_7 = arith.constant 0 : index
    %c0_8 = arith.constant 0 : index
    %12 = vector.load %arg3[%c1, %c0_7, %c0_8] : memref<4x32x128xf32, #tpu.memory_space<vmem>>, vector<1x32x128xf32>
    %13 = vector.shape_cast %12 : vector<1x32x128xf32> to vector<32x128xf32>
    %cst_9 = arith.constant dense<0.000000e+00> : vector<128x128xf32>
    %14 = tpu.matmul %11, %13, %cst_9 {dimension_numbers = #tpu.dot_dimension_numbers<[1], [0], [0], [1], [0, 0, 1, 1], [], []>} : vector<128x32xf32>, vector<32x128xf32>, vector<128x128xf32> -> vector<128x128xf32>
    %15 = arith.addf %10, %14 : vector<128x128xf32>
    %c126_i32 = arith.constant 126 : i32
    %16 = tpu.dynamic_rotate %7 by %c126_i32 dim 0 : vector<128x32xf32>, i32 -> vector<128x32xf32>
    %c2 = arith.constant 2 : index
    %c0_10 = arith.constant 0 : index
    %c0_11 = arith.constant 0 : index
    %17 = vector.load %arg3[%c2, %c0_10, %c0_11] : memref<4x32x128xf32, #tpu.memory_space<vmem>>, vector<1x32x128xf32>
    %18 = vector.shape_cast %17 : vector<1x32x128xf32> to vector<32x128xf32>
    %cst_12 = arith.constant dense<0.000000e+00> : vector<128x128xf32>
    %19 = tpu.matmul %16, %18, %cst_12 {dimension_numbers = #tpu.dot_dimension_numbers<[1], [0], [0], [1], [0, 0, 1, 1], [], []>} : vector<128x32xf32>, vector<32x128xf32>, vector<128x128xf32> -> vector<128x128xf32>
    %20 = arith.addf %15, %19 : vector<128x128xf32>
    %c125_i32 = arith.constant 125 : i32
    %21 = tpu.dynamic_rotate %7 by %c125_i32 dim 0 : vector<128x32xf32>, i32 -> vector<128x32xf32>
    %c3 = arith.constant 3 : index
    %c0_13 = arith.constant 0 : index
    %c0_14 = arith.constant 0 : index
    %22 = vector.load %arg3[%c3, %c0_13, %c0_14] : memref<4x32x128xf32, #tpu.memory_space<vmem>>, vector<1x32x128xf32>
    %23 = vector.shape_cast %22 : vector<1x32x128xf32> to vector<32x128xf32>
    %cst_15 = arith.constant dense<0.000000e+00> : vector<128x128xf32>
    %24 = tpu.matmul %21, %23, %cst_15 {dimension_numbers = #tpu.dot_dimension_numbers<[1], [0], [0], [1], [0, 0, 1, 1], [], []>} : vector<128x32xf32>, vector<32x128xf32>, vector<128x128xf32> -> vector<128x128xf32>
    %25 = arith.addf %20, %24 : vector<128x128xf32>
    %c0_16 = arith.constant 0 : index
    %c0_17 = arith.constant 0 : index
    %26 = vector.load %arg5[%c0_16, %c0_17] : memref<2x128xf32, #tpu.memory_space<vmem>>, vector<2x128xf32>
    %27 = vector.extract_strided_slice %26 {offsets = [0, 0], sizes = [1, 128], strides = [1, 1]} : vector<2x128xf32> to vector<1x128xf32>
    %28 = vector.broadcast %27 : vector<1x128xf32> to vector<128x128xf32>
    %29 = arith.addf %25, %28 : vector<128x128xf32>
    %cst_18 = arith.constant 0.000000e+00 : f32
    %30 = vector.broadcast %cst_18 : f32 to vector<128x128xf32>
    %31 = arith.maximumf %29, %30 : vector<128x128xf32>
    %c0_19 = arith.constant 0 : index
    %c0_20 = arith.constant 0 : index
    %32 = vector.load %arg6[%c0_19, %c0_20] : memref<128x128xf32, #tpu.memory_space<vmem>>, vector<128x128xf32>
    %33 = arith.mulf %31, %32 : vector<128x128xf32>
    %34 = vector.shape_cast %33 : vector<128x128xf32> to vector<16x8x128xf32>
    %cst_21 = arith.constant dense<0xFF800000> : vector<16x128xf32>
    %35 = vector.multi_reduction <maximumf>, %34, %cst_21 [1] : vector<16x8x128xf32> to vector<16x128xf32>
    %c0_22 = arith.constant 0 : index
    %c0_23 = arith.constant 0 : index
    %36 = vector.load %arg4[%c0_22, %c0_23] : memref<128x128xf32, #tpu.memory_space<vmem>>, vector<128x128xf32>
    %cst_24 = arith.constant dense<0.000000e+00> : vector<16x128xf32>
    %37 = tpu.matmul %35, %36, %cst_24 {dimension_numbers = #tpu.dot_dimension_numbers<[1], [0], [0], [1], [0, 0, 1, 1], [], []>} : vector<16x128xf32>, vector<128x128xf32>, vector<16x128xf32> -> vector<16x128xf32>
    %38 = vector.extract_strided_slice %26 {offsets = [1, 0], sizes = [1, 128], strides = [1, 1]} : vector<2x128xf32> to vector<1x128xf32>
    %39 = vector.broadcast %38 : vector<1x128xf32> to vector<16x128xf32>
    %40 = arith.addf %37, %39 : vector<16x128xf32>
    %cst_25 = arith.constant dense<0xFF800000> : vector<16xf32>
    %41 = vector.multi_reduction <maximumf>, %40, %cst_25 [1] : vector<16x128xf32> to vector<16xf32>
    %42 = vector.shape_cast %41 : vector<16xf32> to vector<16x1xf32>
    %43 = vector.broadcast %42 : vector<16x1xf32> to vector<16x128xf32>
    %44 = arith.subf %40, %43 : vector<16x128xf32>
    %45 = math.exp %44 : vector<16x128xf32>
    %cst_26 = arith.constant dense<0.000000e+00> : vector<16xf32>
    %46 = vector.multi_reduction <add>, %45, %cst_26 [1] : vector<16x128xf32> to vector<16xf32>
    %47 = vector.shape_cast %46 : vector<16xf32> to vector<16x1xf32>
    %48 = tpu.reciprocal %47 {approx = true} : vector<16x1xf32> -> vector<16x1xf32>
    %49 = vector.broadcast %48 : vector<16x1xf32> to vector<16x128xf32>
    %50 = arith.mulf %45, %49 : vector<16x128xf32>
    %c0_27 = arith.constant 0 : index
    %c0_28 = arith.constant 0 : index
    %51 = vector.load %arg7[%c0_27, %c0_28] : memref<16x128xf32, #tpu.memory_space<vmem>>, vector<16x128xf32>
    tpu.vector_store %arg7[%c0_27, %c0_28], %50 {strides = array<i32>} : memref<16x128xf32, #tpu.memory_space<vmem>>, vector<16x128xf32>,
    return
  }
  func.func @transform_0(%arg0: i32) -> (i32, i32) {
    %c0_i32 = arith.constant 0 : i32
    %c0_i32_0 = arith.constant 0 : i32
    return %arg0, %c0_i32 : i32, i32
  }
  func.func @transform_1(%arg0: i32) -> (i32, i32) {
    %c0_i32 = arith.constant 0 : i32
    %c0_i32_0 = arith.constant 0 : i32
    %c0_i32_1 = arith.constant 0 : i32
    return %c0_i32, %c0_i32_0 : i32, i32
  }
  func.func @transform_2(%arg0: i32) -> (i32, i32, i32) {
    %c0_i32 = arith.constant 0 : i32
    %c0_i32_0 = arith.constant 0 : i32
    %c0_i32_1 = arith.constant 0 : i32
    %c0_i32_2 = arith.constant 0 : i32
    return %c0_i32, %c0_i32_0, %c0_i32_1 : i32, i32, i32
  }
  func.func @transform_3(%arg0: i32) -> (i32, i32) {
    %c0_i32 = arith.constant 0 : i32
    %c0_i32_0 = arith.constant 0 : i32
    %c0_i32_1 = arith.constant 0 : i32
    return %c0_i32, %c0_i32_0 : i32, i32
  }
  func.func @transform_4(%arg0: i32) -> (i32, i32) {
    %c0_i32 = arith.constant 0 : i32
    %c0_i32_0 = arith.constant 0 : i32
    %c0_i32_1 = arith.constant 0 : i32
    return %c0_i32, %c0_i32_0 : i32, i32
  }
  func.func @transform_5(%arg0: i32) -> (i32, i32) {
    %c0_i32 = arith.constant 0 : i32
    %c0_i32_0 = arith.constant 0 : i32
    %c0_i32_1 = arith.constant 0 : i32
    return %c0_i32, %c0_i32_0 : i32, i32
  }
  func.func @transform_6(%arg0: i32) -> (i32, i32) {
    %c0_i32 = arith.constant 0 : i32
    %c0_i32_0 = arith.constant 0 : i32
    return %arg0, %c0_i32 : i32, i32
  }
}

</mosaic_0001>

<llo_original>
// kernel: cnn_forward.1
$region0: #{cnn_forward.1}
  #allocation0 [shape = 'u32[]', space=smem, size = 0x4, offset = 0x4, fixed_abs, tag = 'smem constant byte address 0x4 - core index']
  #allocation1 [shape = 'u32[144,128]{1,0:T(1,128)}', space=vmem, size = 0x12000, scoped, tag = 'internal scratch']
  %s0 = inlined_call_operand.vmem [shape: s32[256,1], index: 0, kind: input, shape index: {}]
  %s1 = inlined_call_operand.vmem [shape: f32[128,32], index: 1, kind: input, shape index: {}]
  %s2 = inlined_call_operand.vmem [shape: f32[4,32,128], index: 2, kind: input, shape index: {}]
  %s3 = inlined_call_operand.vmem [shape: f32[128,128], index: 3, kind: input, shape index: {}]
  %s4 = inlined_call_operand.vmem [shape: f32[2,128], index: 4, kind: input, shape index: {}]
  %s5 = inlined_call_operand.vmem [shape: f32[128,128], index: 5, kind: input, shape index: {}]
  %s6 = inlined_call_operand.vmem [shape: f32[32,128], index: 6, kind: output, shape index: {}]
  %s7 = sld [smem:[#allocation0]]
  $region57: #{cnn_forward.1} parent=0
    _
  %s9 = ssub.s32 1, %s7
  %s10 = scalar_select 0, %s9, %s7
  loop: start=0, step=1, limit=4
  $region2: #{cnn_forward.1} parent=0 // loop_pre_header
    _
  $region3: #{cnn_forward.1} parent=0 // loop_header
    %s12 = sphi 0, %s16
    %p13 = scmp.ge.s32.totalorder %s12, 4
    %s22 = sphi 0, %s24
    %s25 = sphi 0, %s22
    %s26 = sphi 0, %s25
    %s42 = sphi 0, %s26
    %s46 = sphi 0, %s46
    %s48 = sphi 0, %s46
    %s49 = sphi 0, %s48
    %s63 = sphi 0, %s49
    %s67 = sphi 0, %s67
    %s69 = sphi 0, %s67
    %s70 = sphi 0, %s69
    %s84 = sphi 0, %s70
    %s88 = sphi 0, %s88
    %s90 = sphi 0, %s88
    %s91 = sphi 0, %s90
    %s105 = sphi 0, %s91
    %s109 = sphi 0, %s109
    %s111 = sphi 0, %s109
    %s112 = sphi 0, %s111
    %s126 = sphi 0, %s112
    %s130 = sphi 0, %s130
    %s132 = sphi 0, %s130
    %s133 = sphi 0, %s132
    %s147 = sphi 0, %s133
    %s153 = sphi 0, %s155
    %s156 = sphi 0, %s153
    %s157 = sphi 0, %s156
    %s173 = sphi 0, %s157
  $region4: #{cnn_forward.1} parent=0 // loop_header_branch
    %15 = sbr.rel (%p13) target = $region8
  $region5: #{cnn_forward.1} parent=0 // loop_body
    %s17 = ssub.s32 %s12, 1
    %s18 = ssub.s32 %s12, 2
    %s19 = sadd.s32 %s12, 1
    %s20 = ssub.s32 %s12, %s19
    %p21 = scmp.eq.s32.totalorder %s20, 0
    %s23 = sadd.s32 %s22, 1
    %s24 = scalar_select %p21, %s22, %s23
    %p27 = pneg %p21
    %p28 = scmp.eq.s32.totalorder %s12, 1
    %p29 = por %p27, %p28
    %p30 = scmp.ne.s32.totalorder %s22, %s25
    %p31 = scmp.eq.s32.totalorder %s12, 0
    %p32 = por %p30, %p31
    %p33 = scmp.ne.s32.totalorder %s22, %s25
    %p34 = scmp.eq.s32.totalorder %s17, 1
    %p35 = por %p33, %p34
    %p36 = scmp.ne.s32.totalorder %s25, %s26
    %p37 = scmp.eq.s32.totalorder %s17, 0
    %p38 = por %p36, %p37
    %p39 = scmp.ne.s32.totalorder %s25, %s26
    %p40 = scmp.eq.s32.totalorder %s18, 1
    %p41 = por %p39, %p40
    %p43 = scmp.ne.s32.totalorder %s26, %s42
    %p44 = scmp.eq.s32.totalorder %s18, 0
    %p45 = por %p43, %p44
    %s47 = sadd.s32 %s46, 1
    %p50 = scmp.eq.s32.totalorder %s12, 1
    %p51 = scmp.ne.s32.totalorder %s46, %s48
    %p52 = scmp.eq.s32.totalorder %s12, 0
    %p53 = por %p51, %p52
    %p54 = scmp.ne.s32.totalorder %s46, %s48
    %p55 = scmp.eq.s32.totalorder %s17, 1
    %p56 = por %p54, %p55
    %p57 = scmp.ne.s32.totalorder %s48, %s49
    %p58 = scmp.eq.s32.totalorder %s17, 0
    %p59 = por %p57, %p58
    %p60 = scmp.ne.s32.totalorder %s48, %s49
    %p61 = scmp.eq.s32.totalorder %s18, 1
    %p62 = por %p60, %p61
    %p64 = scmp.ne.s32.totalorder %s49, %s63
    %p65 = scmp.eq.s32.totalorder %s18, 0
    %p66 = por %p64, %p65
    %s68 = sadd.s32 %s67, 1
    %p71 = scmp.eq.s32.totalorder %s12, 1
    %p72 = scmp.ne.s32.totalorder %s67, %s69
    %p73 = scmp.eq.s32.totalorder %s12, 0
    %p74 = por %p72, %p73
    %p75 = scmp.ne.s32.totalorder %s67, %s69
    %p76 = scmp.eq.s32.totalorder %s17, 1
    %p77 = por %p75, %p76
    %p78 = scmp.ne.s32.totalorder %s69, %s70
    %p79 = scmp.eq.s32.totalorder %s17, 0
    %p80 = por %p78, %p79
    %p81 = scmp.ne.s32.totalorder %s69, %s70
    %p82 = scmp.eq.s32.totalorder %s18, 1
    %p83 = por %p81, %p82
    %p85 = scmp.ne.s32.totalorder %s70, %s84
    %p86 = scmp.eq.s32.totalorder %s18, 0
    %p87 = por %p85, %p86
    %s89 = sadd.s32 %s88, 1
    %p92 = scmp.eq.s32.totalorder %s12, 1
    %p93 = scmp.ne.s32.totalorder %s88, %s90
    %p94 = scmp.eq.s32.totalorder %s12, 0
    %p95 = por %p93, %p94
    %p96 = scmp.ne.s32.totalorder %s88, %s90
    %p97 = scmp.eq.s32.totalorder %s17, 1
    %p98 = por %p96, %p97
    %p99 = scmp.ne.s32.totalorder %s90, %s91
    %p100 = scmp.eq.s32.totalorder %s17, 0
    %p101 = por %p99, %p100
    %p102 = scmp.ne.s32.totalorder %s90, %s91
    %p103 = scmp.eq.s32.totalorder %s18, 1
    %p104 = por %p102, %p103
    %p106 = scmp.ne.s32.totalorder %s91, %s105
    %p107 = scmp.eq.s32.totalorder %s18, 0
    %p108 = por %p106, %p107
    %s110 = sadd.s32 %s109, 1
    %p113 = scmp.eq.s32.totalorder %s12, 1
    %p114 = scmp.ne.s32.totalorder %s109, %s111
    %p115 = scmp.eq.s32.totalorder %s12, 0
    %p116 = por %p114, %p115
    %p117 = scmp.ne.s32.totalorder %s109, %s111
    %p118 = scmp.eq.s32.totalorder %s17, 1
    %p119 = por %p117, %p118
    %p120 = scmp.ne.s32.totalorder %s111, %s112
    %p121 = scmp.eq.s32.totalorder %s17, 0
    %p122 = por %p120, %p121
    %p123 = scmp.ne.s32.totalorder %s111, %s112
    %p124 = scmp.eq.s32.totalorder %s18, 1
    %p125 = por %p123, %p124
    %p127 = scmp.ne.s32.totalorder %s112, %s126
    %p128 = scmp.eq.s32.totalorder %s18, 0
    %p129 = por %p127, %p128
    %s131 = sadd.s32 %s130, 1
    %p134 = scmp.eq.s32.totalorder %s12, 1
    %p135 = scmp.ne.s32.totalorder %s130, %s132
    %p136 = scmp.eq.s32.totalorder %s12, 0
    %p137 = por %p135, %p136
    %p138 = scmp.ne.s32.totalorder %s130, %s132
    %p139 = scmp.eq.s32.totalorder %s17, 1
    %p140 = por %p138, %p139
    %p141 = scmp.ne.s32.totalorder %s132, %s133
    %p142 = scmp.eq.s32.totalorder %s17, 0
    %p143 = por %p141, %p142
    %p144 = scmp.ne.s32.totalorder %s132, %s133
    %p145 = scmp.eq.s32.totalorder %s18, 1
    %p146 = por %p144, %p145
    %p148 = scmp.ne.s32.totalorder %s133, %s147
    %p149 = scmp.eq.s32.totalorder %s18, 0
    %p150 = por %p148, %p149
    %s151 = ssub.s32 %s12, %s19
    %p152 = scmp.eq.s32.totalorder %s151, 0
    %s154 = sadd.s32 %s153, 1
    %s155 = scalar_select %p152, %s153, %s154
    %p158 = pneg %p152
    %p159 = scmp.eq.s32.totalorder %s12, 1
    %p160 = por %p158, %p159
    %p161 = scmp.ne.s32.totalorder %s153, %s156
    %p162 = scmp.eq.s32.totalorder %s12, 0
    %p163 = por %p161, %p162
    %p164 = scmp.ne.s32.totalorder %s153, %s156
    %p165 = scmp.eq.s32.totalorder %s17, 1
    %p166 = por %p164, %p165
    %p167 = scmp.ne.s32.totalorder %s156, %s157
    %p168 = scmp.eq.s32.totalorder %s17, 0
    %p169 = por %p167, %p168
    %p170 = scmp.ne.s32.totalorder %s156, %s157
    %p171 = scmp.eq.s32.totalorder %s18, 1
    %p172 = por %p170, %p171
    %p174 = scmp.ne.s32.totalorder %s157, %s173
    %p175 = scmp.eq.s32.totalorder %s18, 0
    %p176 = por %p174, %p175
    %p177 = scmp.le.s32.totalorder 1, %s12
    %p178 = scmp.lt.s32.totalorder %s12, 3
    %p179 = pnand %p177, %p178
    %p180 = pneg %p179
    // Predicated region
    $region9: #{cnn_forward.1} parent=5 // pred_check
      _
    $region10: #{cnn_forward.1} parent=5 // pred_check_branch
      %182 = sbr.rel (%p179) target = $region12
    $region11: #{cnn_forward.1} parent=5 // pred_region
      %s183 = ssub.s32 %s12, 1
      // Predicated region
      $region13: #{cnn_forward.1} parent=11 // pred_check
        %p184 = pneg %p59
      $region14: #{cnn_forward.1} parent=11 // pred_check_branch
        %186 = sbr.rel (%p184) target = $region16
      $region15: #{cnn_forward.1} parent=11 // pred_region
        _
      $region16: #{cnn_forward.1} parent=11 // pred_fallthru
        _
      // Predicated region
      $region17: #{cnn_forward.1} parent=11 // pred_check
        %p187 = pneg %p80
      $region18: #{cnn_forward.1} parent=11 // pred_check_branch
        %189 = sbr.rel (%p187) target = $region20
      $region19: #{cnn_forward.1} parent=11 // pred_region
        _
      $region20: #{cnn_forward.1} parent=11 // pred_fallthru
        _
      // Predicated region
      $region21: #{cnn_forward.1} parent=11 // pred_check
        %p190 = pneg %p101
      $region22: #{cnn_forward.1} parent=11 // pred_check_branch
        %192 = sbr.rel (%p190) target = $region24
      $region23: #{cnn_forward.1} parent=11 // pred_region
        _
      $region24: #{cnn_forward.1} parent=11 // pred_fallthru
        _
      // Predicated region
      $region25: #{cnn_forward.1} parent=11 // pred_check
        %p193 = pneg %p122
      $region26: #{cnn_forward.1} parent=11 // pred_check_branch
        %195 = sbr.rel (%p193) target = $region28
      $region27: #{cnn_forward.1} parent=11 // pred_region
        _
      $region28: #{cnn_forward.1} parent=11 // pred_fallthru
        _
      // Predicated region
      $region29: #{cnn_forward.1} parent=11 // pred_check
        %p196 = pneg %p143
      $region30: #{cnn_forward.1} parent=11 // pred_check_branch
        %198 = sbr.rel (%p196) target = $region32
      $region31: #{cnn_forward.1} parent=11 // pred_region
        _
      $region32: #{cnn_forward.1} parent=11 // pred_fallthru
        _
    $region12: #{cnn_forward.1} parent=5 // pred_fallthru
      _
    %p199 = scmp.lt.s32.totalorder %s12, 2
    // Predicated region
    $region33: #{cnn_forward.1} parent=5 // pred_check
      %p200 = pneg %p199
    $region34: #{cnn_forward.1} parent=5 // pred_check_branch
      %202 = sbr.rel (%p200) target = $region36
    $region35: #{cnn_forward.1} parent=5 // pred_region
      // Predicated region
      $region37: #{cnn_forward.1} parent=35 // pred_check
        %p203 = pneg %p32
      $region38: #{cnn_forward.1} parent=35 // pred_check_branch
        %205 = sbr.rel (%p203) target = $region40
      $region39: #{cnn_forward.1} parent=35 // pred_region
        %s206 = smul.u32 16, %s12
        %p207 = scmp.lt.s32.totalorder %s206, 31
        %s208 = scalar_select %p207, %s206, 31
        %s209 = smul.addr %s208, 8
        %s210 = scalar_lea.vmem %s0, %s209
        %s211 = smul.u32 16, %s12
      $region40: #{cnn_forward.1} parent=35 // pred_fallthru
        _
    $region36: #{cnn_forward.1} parent=5 // pred_fallthru
      _
    %p212 = scmp.le.s32.totalorder 1, %s12
    %p213 = scmp.lt.s32.totalorder %s12, 3
    %p214 = pnand %p212, %p213
    %p215 = pneg %p214
    // Predicated region
    $region41: #{cnn_forward.1} parent=5 // pred_check
      _
    $region42: #{cnn_forward.1} parent=5 // pred_check_branch
      %217 = sbr.rel (%p214) target = $region44
    $region43: #{cnn_forward.1} parent=5 // pred_region
      %s218 = ssub.s32 %s12, 1
      %s219 = smul.u32 16, %s17
      %p220 = scmp.lt.s32.totalorder %s219, 31
      %s221 = scalar_select %p220, %s219, 31
      %s222 = smul.addr %s221, 8
      %s223 = scalar_lea.vmem %s0, %s222
      %p224 = pneg %p38
      %p225 = pneg %p35
      %p226 = pneg %p59
      %p227 = pneg %p56
      %p228 = pneg %p80
      %p229 = pneg %p77
      %p230 = pneg %p101
      %p231 = pneg %p98
      %p232 = pneg %p122
      %p233 = pneg %p119
      %p234 = pneg %p143
      %p235 = pneg %p140
      %p236 = pneg %p169
      %p237 = pneg %p166
      %s238 = smul.u32 2, %s17
      %p239 = scmp.lt.s32.totalorder %s238, 3
      %s240 = scalar_select %p239, %s238, 3
      %s241 = smul.addr %s240, 8
      %s242 = scalar_lea.vmem %s6, %s241
      %s243 = smul.u32 16, %s17
      %p244 = scmp.lt.s32.totalorder %s243, 31
      %s245 = scalar_select %p244, %s243, 31
      %s246 = smul.addr %s245, 8
      %s247 = scalar_lea.vmem %s0, %s246
      %s248 = smul.u32 16, %s17
      %s249 = smul.u32 2, %s17
      %p250 = scmp.lt.s32.totalorder %s249, 3
      %s251 = scalar_select %p250, %s249, 3
      %s252 = smul.addr %s251, 8
      %s253 = scalar_lea.vmem %s6, %s252
      %s254 = smul.u32 2, %s17
      %v255 = vld [vmem:[%s247] sm:$0xff]
      %v256 = vld [vmem:[%s247 + $0x8] sm:$0xff]
      %v257 = vld [vmem:[%s247 + $0x10] sm:$0xff]
      %v258 = vld [vmem:[%s247 + $0x18] sm:$0xff]
      %v259 = vld [vmem:[%s247 + $0x20] sm:$0xff]
      %v260 = vld [vmem:[%s247 + $0x28] sm:$0xff]
      %v261 = vld [vmem:[%s247 + $0x30] sm:$0xff]
      %v262 = vld [vmem:[%s247 + $0x38] sm:$0xff]
      %v263 = vld [vmem:[%s247 + $0x40] sm:$0xff]
      %v264 = vld [vmem:[%s247 + $0x48] sm:$0xff]
      %v265 = vld [vmem:[%s247 + $0x50] sm:$0xff]
      %v266 = vld [vmem:[%s247 + $0x58] sm:$0xff]
      %v267 = vld [vmem:[%s247 + $0x60] sm:$0xff]
      %v268 = vld [vmem:[%s247 + $0x68] sm:$0xff]
      %v269 = vld [vmem:[%s247 + $0x70] sm:$0xff]
      %v270 = vld [vmem:[%s247 + $0x78] sm:$0xff]
      %v271 = vlaneseq
      %v272 = vand.u32 %v271, 127
      %273 = vset.pattern.permute.xlu0 0
      %274 = vperm.xlu0 %273, %v255
      %v275 = vpop.permute.xlu0 %274
      %276 = vset.pattern.permute.xlu0 0
      %277 = vperm.xlu0 %276, %v256
      %v278 = vpop.permute.xlu0 %277
      %279 = vset.pattern.permute.xlu0 0
      %280 = vperm.xlu0 %279, %v257
      %v281 = vpop.permute.xlu0 %280
      %282 = vset.pattern.permute.xlu0 0
      %283 = vperm.xlu0 %282, %v258
      %v284 = vpop.permute.xlu0 %283
      %285 = vset.pattern.permute.xlu0 0
      %286 = vperm.xlu0 %285, %v259
      %v287 = vpop.permute.xlu0 %286
      %288 = vset.pattern.permute.xlu0 0
      %289 = vperm.xlu0 %288, %v260
      %v290 = vpop.permute.xlu0 %289
      %291 = vset.pattern.permute.xlu0 0
      %292 = vperm.xlu0 %291, %v261
      %v293 = vpop.permute.xlu0 %292
      %294 = vset.pattern.permute.xlu0 0
      %295 = vperm.xlu0 %294, %v262
      %v296 = vpop.permute.xlu0 %295
      %297 = vset.pattern.permute.xlu0 0
      %298 = vperm.xlu0 %297, %v263
      %v299 = vpop.permute.xlu0 %298
      %300 = vset.pattern.permute.xlu0 0
      %301 = vperm.xlu0 %300, %v264
      %v302 = vpop.permute.xlu0 %301
      %303 = vset.pattern.permute.xlu0 0
      %304 = vperm.xlu0 %303, %v265
      %v305 = vpop.permute.xlu0 %304
      %306 = vset.pattern.permute.xlu0 0
      %307 = vperm.xlu0 %306, %v266
      %v308 = vpop.permute.xlu0 %307
      %309 = vset.pattern.permute.xlu0 0
      %310 = vperm.xlu0 %309, %v267
      %v311 = vpop.permute.xlu0 %310
      %312 = vset.pattern.permute.xlu0 0
      %313 = vperm.xlu0 %312, %v268
      %v314 = vpop.permute.xlu0 %313
      %315 = vset.pattern.permute.xlu0 0
      %316 = vperm.xlu0 %315, %v269
      %v317 = vpop.permute.xlu0 %316
      %318 = vset.pattern.permute.xlu0 0
      %319 = vperm.xlu0 %318, %v270
      %v320 = vpop.permute.xlu0 %319
      %vm321 = vcmp.eq.s32.totalorder %v275, %v272
      %vm322 = vcmp.eq.s32.totalorder %v278, %v272
      %vm323 = vcmp.eq.s32.totalorder %v281, %v272
      %vm324 = vcmp.eq.s32.totalorder %v284, %v272
      %vm325 = vcmp.eq.s32.totalorder %v287, %v272
      %vm326 = vcmp.eq.s32.totalorder %v290, %v272
      %vm327 = vcmp.eq.s32.totalorder %v293, %v272
      %vm328 = vcmp.eq.s32.totalorder %v296, %v272
      %vm329 = vcmp.eq.s32.totalorder %v299, %v272
      %vm330 = vcmp.eq.s32.totalorder %v302, %v272
      %vm331 = vcmp.eq.s32.totalorder %v305, %v272
      %vm332 = vcmp.eq.s32.totalorder %v308, %v272
      %vm333 = vcmp.eq.s32.totalorder %v311, %v272
      %vm334 = vcmp.eq.s32.totalorder %v314, %v272
      %vm335 = vcmp.eq.s32.totalorder %v317, %v272
      %vm336 = vcmp.eq.s32.totalorder %v320, %v272
      %v337 = vsel %vm321, 1, 0
      %v338 = vsel %vm322, 1, 0
      %v339 = vsel %vm323, 1, 0
      %v340 = vsel %vm324, 1, 0
      %v341 = vsel %vm325, 1, 0
      %v342 = vsel %vm326, 1, 0
      %v343 = vsel %vm327, 1, 0
      %v344 = vsel %vm328, 1, 0
      %v345 = vsel %vm329, 1, 0
      %v346 = vsel %vm330, 1, 0
      %v347 = vsel %vm331, 1, 0
      %v348 = vsel %vm332, 1, 0
      %v349 = vsel %vm333, 1, 0
      %v350 = vsel %vm334, 1, 0
      %v351 = vsel %vm335, 1, 0
      %v352 = vsel %vm336, 1, 0
      %v353 = vcvt.s32.f32 %v337
      %v354 = vcvt.s32.f32 %v338
      %v355 = vcvt.s32.f32 %v339
      %v356 = vcvt.s32.f32 %v340
      %v357 = vcvt.s32.f32 %v341
      %v358 = vcvt.s32.f32 %v342
      %v359 = vcvt.s32.f32 %v343
      %v360 = vcvt.s32.f32 %v344
      %v361 = vcvt.s32.f32 %v345
      %v362 = vcvt.s32.f32 %v346
      %v363 = vcvt.s32.f32 %v347
      %v364 = vcvt.s32.f32 %v348
      %v365 = vcvt.s32.f32 %v349
      %v366 = vcvt.s32.f32 %v350
      %v367 = vcvt.s32.f32 %v351
      %v368 = vcvt.s32.f32 %v352
      %v369 = vld [vmem:[%s1] sm:$0xff]
      %v370 = vld [vmem:[%s1 + $0x8] sm:$0xff]
      %v371 = vld [vmem:[%s1 + $0x10] sm:$0xff]
      %v372 = vld [vmem:[%s1 + $0x18] sm:$0xff]
      %v373 = vld [vmem:[%s1 + $0x20] sm:$0xff]
      %v374 = vld [vmem:[%s1 + $0x28] sm:$0xff]
      %v375 = vld [vmem:[%s1 + $0x30] sm:$0xff]
      %v376 = vld [vmem:[%s1 + $0x38] sm:$0xff]
      %v377 = vld [vmem:[%s1 + $0x40] sm:$0xff]
      %v378 = vld [vmem:[%s1 + $0x48] sm:$0xff]
      %v379 = vld [vmem:[%s1 + $0x50] sm:$0xff]
      %v380 = vld [vmem:[%s1 + $0x58] sm:$0xff]
      %v381 = vld [vmem:[%s1 + $0x60] sm:$0xff]
      %v382 = vld [vmem:[%s1 + $0x68] sm:$0xff]
      %v383 = vld [vmem:[%s1 + $0x70] sm:$0xff]
      %v384 = vld [vmem:[%s1 + $0x78] sm:$0xff]
      %385 = vmatprep.subr.mxu0 0.0
      %386 = vmatpush1.msra.mxu0 %v384
      %387 = vmatprep.subr.mxu0 0.0
      %388 = vmatpush1.msra.mxu0 %v383
      %389 = vmatprep.subr.mxu0 0.0
      %390 = vmatpush1.msra.mxu0 %v382
      %391 = vmatprep.subr.mxu0 0.0
      %392 = vmatpush1.msra.mxu0 %v381
      %393 = vmatprep.subr.mxu0 0.0
      %394 = vmatpush1.msra.mxu0 %v380
      %395 = vmatprep.subr.mxu0 0.0
      %396 = vmatpush1.msra.mxu0 %v379
      %397 = vmatprep.subr.mxu0 0.0
      %398 = vmatpush1.msra.mxu0 %v378
      %399 = vmatprep.subr.mxu0 0.0
      %400 = vmatpush1.msra.mxu0 %v377
      %401 = vmatprep.subr.mxu0 0.0
      %402 = vmatpush1.msra.mxu0 %v376
      %403 = vmatprep.subr.mxu0 0.0
      %404 = vmatpush1.msra.mxu0 %v375
      %405 = vmatprep.subr.mxu0 0.0
      %406 = vmatpush1.msra.mxu0 %v374
      %407 = vmatprep.subr.mxu0 0.0
      %408 = vmatpush1.msra.mxu0 %v373
      %409 = vmatprep.subr.mxu0 0.0
      %410 = vmatpush1.msra.mxu0 %v372
      %411 = vmatprep.subr.mxu0 0.0
      %412 = vmatpush1.msra.mxu0 %v371
      %413 = vmatprep.subr.mxu0 0.0
      %414 = vmatpush1.msra.mxu0 %v370
      %415 = vmatprep.subr.mxu0 0.0
      %416 = vmatpush1.msra.mxu0 %v369
      %417 = vmatprep.subr.mxu0 0.0
      %418 = vmatpush2.msra.mxu0 0.0
      %419 = vmatprep.subr.mxu0 0.0
      %420 = vmatpush2.msra.mxu0 0.0
      %421 = vmatprep.subr.mxu0 0.0
      %422 = vmatpush2.msra.mxu0 0.0
      %423 = vmatprep.subr.mxu0 0.0
      %424 = vmatpush2.msra.mxu0 0.0
      %425 = vmatprep.subr.mxu0 0.0
      %426 = vmatpush2.msra.mxu0 0.0
      %427 = vmatprep.subr.mxu0 0.0
      %428 = vmatpush2.msra.mxu0 0.0
      %429 = vmatprep.subr.mxu0 0.0
      %430 = vmatpush2.msra.mxu0 0.0
      %431 = vmatprep.subr.mxu0 0.0
      %432 = vmatpush2.msra.mxu0 0.0
      %433 = vmatprep.subr.mxu0 0.0
      %434 = vmatpush2.msra.mxu0 0.0
      %435 = vmatprep.subr.mxu0 0.0
      %436 = vmatpush2.msra.mxu0 0.0
      %437 = vmatprep.subr.mxu0 0.0
      %438 = vmatpush2.msra.mxu0 0.0
      %439 = vmatprep.subr.mxu0 0.0
      %440 = vmatpush2.msra.mxu0 0.0
      %441 = vmatprep.subr.mxu0 0.0
      %442 = vmatpush2.msra.mxu0 0.0
      %443 = vmatprep.subr.mxu0 0.0
      %444 = vmatpush2.msra.mxu0 0.0
      %445 = vmatprep.subr.mxu0 0.0
      %446 = vmatpush2.msra.mxu0 0.0
      %447 = vmatprep.subr.mxu0 0.0
      %448 = vmatpush2.msra.mxu0 0.0
      %449 = vmatprep.mubr.f32.mxu0 0.0
      %450 = vmatmul.mubr.f32.gmra.mxu0 %v353
      %v451 = vpop.f32.mrf.mxu0
      %v452 = vadd.f32 0.0, %v451
      %v453 = vpop.f32.mrf.mxu0
      %454 = vmatprep.mubr.f32.mxu0 0.0
      %455 = vmatmul.mubr.f32.gmra.mxu0 %v354
      %v456 = vpop.f32.mrf.mxu0
      %v457 = vadd.f32 0.0, %v456
      %v458 = vpop.f32.mrf.mxu0
      %459 = vmatprep.mubr.f32.mxu0 0.0
      %460 = vmatmul.mubr.f32.gmra.mxu0 %v355
      %v461 = vpop.f32.mrf.mxu0
      %v462 = vadd.f32 0.0, %v461
      %v463 = vpop.f32.mrf.mxu0
      %464 = vmatprep.mubr.f32.mxu0 0.0
      %465 = vmatmul.mubr.f32.gmra.mxu0 %v356
      %v466 = vpop.f32.mrf.mxu0
      %v467 = vadd.f32 0.0, %v466
      %v468 = vpop.f32.mrf.mxu0
      %469 = vmatprep.mubr.f32.mxu0 0.0
      %470 = vmatmul.mubr.f32.gmra.mxu0 %v357
      %v471 = vpop.f32.mrf.mxu0
      %v472 = vadd.f32 0.0, %v471
      %v473 = vpop.f32.mrf.mxu0
      %474 = vmatprep.mubr.f32.mxu0 0.0
      %475 = vmatmul.mubr.f32.gmra.mxu0 %v358
      %v476 = vpop.f32.mrf.mxu0
      %v477 = vadd.f32 0.0, %v476
      %v478 = vpop.f32.mrf.mxu0
      %479 = vmatprep.mubr.f32.mxu0 0.0
      %480 = vmatmul.mubr.f32.gmra.mxu0 %v359
      %v481 = vpop.f32.mrf.mxu0
      %v482 = vadd.f32 0.0, %v481
      %v483 = vpop.f32.mrf.mxu0
      %484 = vmatprep.mubr.f32.mxu0 0.0
      %485 = vmatmul.mubr.f32.gmra.mxu0 %v360
      %v486 = vpop.f32.mrf.mxu0
      %v487 = vadd.f32 0.0, %v486
      %v488 = vpop.f32.mrf.mxu0
      %489 = vmatprep.mubr.f32.mxu0 0.0
      %490 = vmatmul.mubr.f32.gmra.mxu0 %v361
      %v491 = vpop.f32.mrf.mxu0
      %v492 = vadd.f32 0.0, %v491
      %v493 = vpop.f32.mrf.mxu0
      %494 = vmatprep.mubr.f32.mxu0 0.0
      %495 = vmatmul.mubr.f32.gmra.mxu0 %v362
      %v496 = vpop.f32.mrf.mxu0
      %v497 = vadd.f32 0.0, %v496
      %v498 = vpop.f32.mrf.mxu0
      %499 = vmatprep.mubr.f32.mxu0 0.0
      %500 = vmatmul.mubr.f32.gmra.mxu0 %v363
      %v501 = vpop.f32.mrf.mxu0
      %v502 = vadd.f32 0.0, %v501
      %v503 = vpop.f32.mrf.mxu0
      %504 = vmatprep.mubr.f32.mxu0 0.0
      %505 = vmatmul.mubr.f32.gmra.mxu0 %v364
      %v506 = vpop.f32.mrf.mxu0
      %v507 = vadd.f32 0.0, %v506
      %v508 = vpop.f32.mrf.mxu0
      %509 = vmatprep.mubr.f32.mxu0 0.0
      %510 = vmatmul.mubr.f32.gmra.mxu0 %v365
      %v511 = vpop.f32.mrf.mxu0
      %v512 = vadd.f32 0.0, %v511
      %v513 = vpop.f32.mrf.mxu0
      %514 = vmatprep.mubr.f32.mxu0 0.0
      %515 = vmatmul.mubr.f32.gmra.mxu0 %v366
      %v516 = vpop.f32.mrf.mxu0
      %v517 = vadd.f32 0.0, %v516
      %v518 = vpop.f32.mrf.mxu0
      %519 = vmatprep.mubr.f32.mxu0 0.0
      %520 = vmatmul.mubr.f32.gmra.mxu0 %v367
      %v521 = vpop.f32.mrf.mxu0
      %v522 = vadd.f32 0.0, %v521
      %v523 = vpop.f32.mrf.mxu0
      %524 = vmatprep.mubr.f32.mxu0 0.0
      %525 = vmatmul.mubr.f32.gmra.mxu0 %v368
      %v526 = vpop.f32.mrf.mxu0
      %v527 = vadd.f32 0.0, %v526
      %v528 = vpop.f32.mrf.mxu0
      %529 = vdwg.mxu0
      %v530 = vld [vmem:[%s2] sm:$0xff]
      %v531 = vld [vmem:[%s2 + $0x8] sm:$0xff]
      %v532 = vld [vmem:[%s2 + $0x10] sm:$0xff]
      %v533 = vld [vmem:[%s2 + $0x18] sm:$0xff]
      %v534 = vrot.slane %v452, 1
      %v535 = vrot.slane %v457, 1
      %v536 = vrot.slane %v462, 1
      %v537 = vrot.slane %v467, 1
      %v538 = vrot.slane %v472, 1
      %v539 = vrot.slane %v477, 1
      %v540 = vrot.slane %v482, 1
      %v541 = vrot.slane %v487, 1
      %v542 = vrot.slane %v492, 1
      %v543 = vrot.slane %v497, 1
      %v544 = vrot.slane %v502, 1
      %v545 = vrot.slane %v507, 1
      %v546 = vrot.slane %v512, 1
      %v547 = vrot.slane %v517, 1
      %v548 = vrot.slane %v522, 1
      %v549 = vrot.slane %v527, 1
      %v550 = vlaneseq
      %v551 = vshrl.u32 %v550, 7
      %vm552 = vcmp.lt.s32.totalorder %v551, 7
      %v553 = vsel %vm552, %v548, %v549
      %v554 = vsel %vm552, %v547, %v548
      %v555 = vsel %vm552, %v546, %v547
      %v556 = vsel %vm552, %v545, %v546
      %v557 = vsel %vm552, %v544, %v545
      %v558 = vsel %vm552, %v543, %v544
      %v559 = vsel %vm552, %v542, %v543
      %v560 = vsel %vm552, %v541, %v542
      %v561 = vsel %vm552, %v540, %v541
      %v562 = vsel %vm552, %v539, %v540
      %v563 = vsel %vm552, %v538, %v539
      %v564 = vsel %vm552, %v537, %v538
      %v565 = vsel %vm552, %v536, %v537
      %v566 = vsel %vm552, %v535, %v536
      %v567 = vsel %vm552, %v534, %v535
      %v568 = vsel %vm552, %v549, %v534
      %s569 = scalar_lea.vmem %s2, 32
      %v570 = vld [vmem:[%s569] sm:$0xff]
      %v571 = vld [vmem:[%s569 + $0x8] sm:$0xff]
      %v572 = vld [vmem:[%s569 + $0x10] sm:$0xff]
      %v573 = vld [vmem:[%s569 + $0x18] sm:$0xff]
      %vm574 = vcmask 261120
      %v576 = vsel %vm574, %v567, 0
      %v579 = vsel %vm574, %v566, 0
      %v582 = vsel %vm574, %v565, 0
      %v585 = vsel %vm574, %v564, 0
      %v588 = vsel %vm574, %v563, 0
      %v591 = vsel %vm574, %v562, 0
      %v594 = vsel %vm574, %v561, 0
      %v597 = vsel %vm574, %v560, 0
      %v600 = vsel %vm574, %v559, 0
      %v603 = vsel %vm574, %v558, 0
      %v606 = vsel %vm574, %v557, 0
      %v609 = vsel %vm574, %v556, 0
      %v612 = vsel %vm574, %v555, 0
      %v615 = vsel %vm574, %v554, 0
      %v618 = vsel %vm574, %v553, 0
      %v621 = vsel %vm574, %v568, 0
      %623 = vmatprep.subr.mxu0 0.0
      %624 = vmatpush1.msra.mxu0 0.0
      %625 = vmatprep.subr.mxu0 0.0
      %626 = vmatpush1.msra.mxu0 0.0
      %627 = vmatprep.subr.mxu0 0.0
      %628 = vmatpush1.msra.mxu0 0.0
      %629 = vmatprep.subr.mxu0 0.0
      %630 = vmatpush1.msra.mxu0 0.0
      %631 = vmatprep.subr.mxu0 0.0
      %632 = vmatpush1.msra.mxu0 0.0
      %633 = vmatprep.subr.mxu0 0.0
      %634 = vmatpush1.msra.mxu0 0.0
      %635 = vmatprep.subr.mxu0 0.0
      %636 = vmatpush1.msra.mxu0 0.0
      %637 = vmatprep.subr.mxu0 0.0
      %638 = vmatpush1.msra.mxu0 0.0
      %639 = vmatprep.subr.mxu0 0.0
      %640 = vmatpush1.msra.mxu0 0.0
      %641 = vmatprep.subr.mxu0 0.0
      %642 = vmatpush1.msra.mxu0 0.0
      %643 = vmatprep.subr.mxu0 0.0
      %644 = vmatpush1.msra.mxu0 0.0
      %645 = vmatprep.subr.mxu0 0.0
      %646 = vmatpush1.msra.mxu0 0.0
      %647 = vmatprep.subr.mxu0 0.0
      %648 = vmatpush1.msra.mxu0 %v573
      %649 = vmatprep.subr.mxu0 0.0
      %650 = vmatpush1.msra.mxu0 %v572
      %651 = vmatprep.subr.mxu0 0.0
      %652 = vmatpush1.msra.mxu0 %v571
      %653 = vmatprep.subr.mxu0 0.0
      %654 = vmatpush1.msra.mxu0 %v570
      %655 = vmatprep.subr.mxu0 0.0
      %656 = vmatpush2.msra.mxu0 0.0
      %657 = vmatprep.subr.mxu0 0.0
      %658 = vmatpush2.msra.mxu0 0.0
      %659 = vmatprep.subr.mxu0 0.0
      %660 = vmatpush2.msra.mxu0 0.0
      %661 = vmatprep.subr.mxu0 0.0
      %662 = vmatpush2.msra.mxu0 0.0
      %663 = vmatprep.subr.mxu0 0.0
      %664 = vmatpush2.msra.mxu0 0.0
      %665 = vmatprep.subr.mxu0 0.0
      %666 = vmatpush2.msra.mxu0 0.0
      %667 = vmatprep.subr.mxu0 0.0
      %668 = vmatpush2.msra.mxu0 0.0
      %669 = vmatprep.subr.mxu0 0.0
      %670 = vmatpush2.msra.mxu0 0.0
      %671 = vmatprep.subr.mxu0 0.0
      %672 = vmatpush2.msra.mxu0 0.0
      %673 = vmatprep.subr.mxu0 0.0
      %674 = vmatpush2.msra.mxu0 0.0
      %675 = vmatprep.subr.mxu0 0.0
      %676 = vmatpush2.msra.mxu0 0.0
      %677 = vmatprep.subr.mxu0 0.0
      %678 = vmatpush2.msra.mxu0 0.0
      %679 = vmatprep.subr.mxu0 0.0
      %680 = vmatpush2.msra.mxu0 0.0
      %681 = vmatprep.subr.mxu0 0.0
      %682 = vmatpush2.msra.mxu0 0.0
      %683 = vmatprep.subr.mxu0 0.0
      %684 = vmatpush2.msra.mxu0 0.0
      %685 = vmatprep.subr.mxu0 0.0
      %686 = vmatpush2.msra.mxu0 0.0
      %687 = vmatprep.mubr.f32.mxu0 0.0
      %688 = vmatmul.mubr.f32.gmra.mxu0 %v576
      %v689 = vpop.f32.mrf.mxu0
      %v690 = vadd.f32 0.0, %v689
      %v691 = vpop.f32.mrf.mxu0
      %692 = vmatprep.mubr.f32.mxu0 0.0
      %693 = vmatmul.mubr.f32.gmra.mxu0 %v579
      %v694 = vpop.f32.mrf.mxu0
      %v695 = vadd.f32 0.0, %v694
      %v696 = vpop.f32.mrf.mxu0
      %697 = vmatprep.mubr.f32.mxu0 0.0
      %698 = vmatmul.mubr.f32.gmra.mxu0 %v582
      %v699 = vpop.f32.mrf.mxu0
      %v700 = vadd.f32 0.0, %v699
      %v701 = vpop.f32.mrf.mxu0
      %702 = vmatprep.mubr.f32.mxu0 0.0
      %703 = vmatmul.mubr.f32.gmra.mxu0 %v585
      %v704 = vpop.f32.mrf.mxu0
      %v705 = vadd.f32 0.0, %v704
      %v706 = vpop.f32.mrf.mxu0
      %707 = vmatprep.mubr.f32.mxu0 0.0
      %708 = vmatmul.mubr.f32.gmra.mxu0 %v588
      %v709 = vpop.f32.mrf.mxu0
      %v710 = vadd.f32 0.0, %v709
      %v711 = vpop.f32.mrf.mxu0
      %712 = vmatprep.mubr.f32.mxu0 0.0
      %713 = vmatmul.mubr.f32.gmra.mxu0 %v591
      %v714 = vpop.f32.mrf.mxu0
      %v715 = vadd.f32 0.0, %v714
      %v716 = vpop.f32.mrf.mxu0
      %717 = vmatprep.mubr.f32.mxu0 0.0
      %718 = vmatmul.mubr.f32.gmra.mxu0 %v594
      %v719 = vpop.f32.mrf.mxu0
      %v720 = vadd.f32 0.0, %v719
      %v721 = vpop.f32.mrf.mxu0
      %722 = vmatprep.mubr.f32.mxu0 0.0
      %723 = vmatmul.mubr.f32.gmra.mxu0 %v597
      %v724 = vpop.f32.mrf.mxu0
      %v725 = vadd.f32 0.0, %v724
      %v726 = vpop.f32.mrf.mxu0
      %727 = vmatprep.mubr.f32.mxu0 0.0
      %728 = vmatmul.mubr.f32.gmra.mxu0 %v600
      %v729 = vpop.f32.mrf.mxu0
      %v730 = vadd.f32 0.0, %v729
      %v731 = vpop.f32.mrf.mxu0
      %732 = vmatprep.mubr.f32.mxu0 0.0
      %733 = vmatmul.mubr.f32.gmra.mxu0 %v603
      %v734 = vpop.f32.mrf.mxu0
      %v735 = vadd.f32 0.0, %v734
      %v736 = vpop.f32.mrf.mxu0
      %737 = vmatprep.mubr.f32.mxu0 0.0
      %738 = vmatmul.mubr.f32.gmra.mxu0 %v606
      %v739 = vpop.f32.mrf.mxu0
      %v740 = vadd.f32 0.0, %v739
      %v741 = vpop.f32.mrf.mxu0
      %742 = vmatprep.mubr.f32.mxu0 0.0
      %743 = vmatmul.mubr.f32.gmra.mxu0 %v609
      %v744 = vpop.f32.mrf.mxu0
      %v745 = vadd.f32 0.0, %v744
      %v746 = vpop.f32.mrf.mxu0
      %747 = vmatprep.mubr.f32.mxu0 0.0
      %748 = vmatmul.mubr.f32.gmra.mxu0 %v612
      %v749 = vpop.f32.mrf.mxu0
      %v750 = vadd.f32 0.0, %v749
      %v751 = vpop.f32.mrf.mxu0
      %752 = vmatprep.mubr.f32.mxu0 0.0
      %753 = vmatmul.mubr.f32.gmra.mxu0 %v615
      %v754 = vpop.f32.mrf.mxu0
      %v755 = vadd.f32 0.0, %v754
      %v756 = vpop.f32.mrf.mxu0
      %757 = vmatprep.mubr.f32.mxu0 0.0
      %758 = vmatmul.mubr.f32.gmra.mxu0 %v618
      %v759 = vpop.f32.mrf.mxu0
      %v760 = vadd.f32 0.0, %v759
      %v761 = vpop.f32.mrf.mxu0
      %762 = vmatprep.mubr.f32.mxu0 0.0
      %763 = vmatmul.mubr.f32.gmra.mxu0 %v621
      %v764 = vpop.f32.mrf.mxu0
      %v765 = vadd.f32 0.0, %v764
      %v766 = vpop.f32.mrf.mxu0
      %767 = vdwg.mxu0
      %v769 = vsel %vm574, %v452, 0
      %v772 = vsel %vm574, %v457, 0
      %v775 = vsel %vm574, %v462, 0
      %v778 = vsel %vm574, %v467, 0
      %v781 = vsel %vm574, %v472, 0
      %v784 = vsel %vm574, %v477, 0
      %v787 = vsel %vm574, %v482, 0
      %v790 = vsel %vm574, %v487, 0
      %v793 = vsel %vm574, %v492, 0
      %v796 = vsel %vm574, %v497, 0
      %v799 = vsel %vm574, %v502, 0
      %v802 = vsel %vm574, %v507, 0
      %v805 = vsel %vm574, %v512, 0
      %v808 = vsel %vm574, %v517, 0
      %v811 = vsel %vm574, %v522, 0
      %v814 = vsel %vm574, %v527, 0
      %816 = vmatprep.subr.mxu0 0.0
      %817 = vmatpush1.msra.mxu0 0.0
      %818 = vmatprep.subr.mxu0 0.0
      %819 = vmatpush1.msra.mxu0 0.0
      %820 = vmatprep.subr.mxu0 0.0
      %821 = vmatpush1.msra.mxu0 0.0
      %822 = vmatprep.subr.mxu0 0.0
      %823 = vmatpush1.msra.mxu0 0.0
      %824 = vmatprep.subr.mxu0 0.0
      %825 = vmatpush1.msra.mxu0 0.0
      %826 = vmatprep.subr.mxu0 0.0
      %827 = vmatpush1.msra.mxu0 0.0
      %828 = vmatprep.subr.mxu0 0.0
      %829 = vmatpush1.msra.mxu0 0.0
      %830 = vmatprep.subr.mxu0 0.0
      %831 = vmatpush1.msra.mxu0 0.0
      %832 = vmatprep.subr.mxu0 0.0
      %833 = vmatpush1.msra.mxu0 0.0
      %834 = vmatprep.subr.mxu0 0.0
      %835 = vmatpush1.msra.mxu0 0.0
      %836 = vmatprep.subr.mxu0 0.0
      %837 = vmatpush1.msra.mxu0 0.0
      %838 = vmatprep.subr.mxu0 0.0
      %839 = vmatpush1.msra.mxu0 0.0
      %840 = vmatprep.subr.mxu0 0.0
      %841 = vmatpush1.msra.mxu0 %v533
      %842 = vmatprep.subr.mxu0 0.0
      %843 = vmatpush1.msra.mxu0 %v532
      %844 = vmatprep.subr.mxu0 0.0
      %845 = vmatpush1.msra.mxu0 %v531
      %846 = vmatprep.subr.mxu0 0.0
      %847 = vmatpush1.msra.mxu0 %v530
      %848 = vmatprep.subr.mxu0 0.0
      %849 = vmatpush2.msra.mxu0 0.0
      %850 = vmatprep.subr.mxu0 0.0
      %851 = vmatpush2.msra.mxu0 0.0
      %852 = vmatprep.subr.mxu0 0.0
      %853 = vmatpush2.msra.mxu0 0.0
      %854 = vmatprep.subr.mxu0 0.0
      %855 = vmatpush2.msra.mxu0 0.0
      %856 = vmatprep.subr.mxu0 0.0
      %857 = vmatpush2.msra.mxu0 0.0
      %858 = vmatprep.subr.mxu0 0.0
      %859 = vmatpush2.msra.mxu0 0.0
      %860 = vmatprep.subr.mxu0 0.0
      %861 = vmatpush2.msra.mxu0 0.0
      %862 = vmatprep.subr.mxu0 0.0
      %863 = vmatpush2.msra.mxu0 0.0
      %864 = vmatprep.subr.mxu0 0.0
      %865 = vmatpush2.msra.mxu0 0.0
      %866 = vmatprep.subr.mxu0 0.0
      %867 = vmatpush2.msra.mxu0 0.0
      %868 = vmatprep.subr.mxu0 0.0
      %869 = vmatpush2.msra.mxu0 0.0
      %870 = vmatprep.subr.mxu0 0.0
      %871 = vmatpush2.msra.mxu0 0.0
      %872 = vmatprep.subr.mxu0 0.0
      %873 = vmatpush2.msra.mxu0 0.0
      %874 = vmatprep.subr.mxu0 0.0
      %875 = vmatpush2.msra.mxu0 0.0
      %876 = vmatprep.subr.mxu0 0.0
      %877 = vmatpush2.msra.mxu0 0.0
      %878 = vmatprep.subr.mxu0 0.0
      %879 = vmatpush2.msra.mxu0 0.0
      %880 = vmatprep.mubr.f32.mxu0 0.0
      %881 = vmatmul.mubr.f32.gmra.mxu0 %v769
      %v882 = vpop.f32.mrf.mxu0
      %v883 = vadd.f32 %v690, %v882
      %v884 = vpop.f32.mrf.mxu0
      %885 = vmatprep.mubr.f32.mxu0 0.0
      %886 = vmatmul.mubr.f32.gmra.mxu0 %v772
      %v887 = vpop.f32.mrf.mxu0
      %v888 = vadd.f32 %v695, %v887
      %v889 = vpop.f32.mrf.mxu0
      %890 = vmatprep.mubr.f32.mxu0 0.0
      %891 = vmatmul.mubr.f32.gmra.mxu0 %v775
      %v892 = vpop.f32.mrf.mxu0
      %v893 = vadd.f32 %v700, %v892
      %v894 = vpop.f32.mrf.mxu0
      %895 = vmatprep.mubr.f32.mxu0 0.0
      %896 = vmatmul.mubr.f32.gmra.mxu0 %v778
      %v897 = vpop.f32.mrf.mxu0
      %v898 = vadd.f32 %v705, %v897
      %v899 = vpop.f32.mrf.mxu0
      %900 = vmatprep.mubr.f32.mxu0 0.0
      %901 = vmatmul.mubr.f32.gmra.mxu0 %v781
      %v902 = vpop.f32.mrf.mxu0
      %v903 = vadd.f32 %v710, %v902
      %v904 = vpop.f32.mrf.mxu0
      %905 = vmatprep.mubr.f32.mxu0 0.0
      %906 = vmatmul.mubr.f32.gmra.mxu0 %v784
      %v907 = vpop.f32.mrf.mxu0
      %v908 = vadd.f32 %v715, %v907
      %v909 = vpop.f32.mrf.mxu0
      %910 = vmatprep.mubr.f32.mxu0 0.0
      %911 = vmatmul.mubr.f32.gmra.mxu0 %v787
      %v912 = vpop.f32.mrf.mxu0
      %v913 = vadd.f32 %v720, %v912
      %v914 = vpop.f32.mrf.mxu0
      %915 = vmatprep.mubr.f32.mxu0 0.0
      %916 = vmatmul.mubr.f32.gmra.mxu0 %v790
      %v917 = vpop.f32.mrf.mxu0
      %v918 = vadd.f32 %v725, %v917
      %v919 = vpop.f32.mrf.mxu0
      %920 = vmatprep.mubr.f32.mxu0 0.0
      %921 = vmatmul.mubr.f32.gmra.mxu0 %v793
      %v922 = vpop.f32.mrf.mxu0
      %v923 = vadd.f32 %v730, %v922
      %v924 = vpop.f32.mrf.mxu0
      %925 = vmatprep.mubr.f32.mxu0 0.0
      %926 = vmatmul.mubr.f32.gmra.mxu0 %v796
      %v927 = vpop.f32.mrf.mxu0
      %v928 = vadd.f32 %v735, %v927
      %v929 = vpop.f32.mrf.mxu0
      %930 = vmatprep.mubr.f32.mxu0 0.0
      %931 = vmatmul.mubr.f32.gmra.mxu0 %v799
      %v932 = vpop.f32.mrf.mxu0
      %v933 = vadd.f32 %v740, %v932
      %v934 = vpop.f32.mrf.mxu0
      %935 = vmatprep.mubr.f32.mxu0 0.0
      %936 = vmatmul.mubr.f32.gmra.mxu0 %v802
      %v937 = vpop.f32.mrf.mxu0
      %v938 = vadd.f32 %v745, %v937
      %v939 = vpop.f32.mrf.mxu0
      %940 = vmatprep.mubr.f32.mxu0 0.0
      %941 = vmatmul.mubr.f32.gmra.mxu0 %v805
      %v942 = vpop.f32.mrf.mxu0
      %v943 = vadd.f32 %v750, %v942
      %v944 = vpop.f32.mrf.mxu0
      %945 = vmatprep.mubr.f32.mxu0 0.0
      %946 = vmatmul.mubr.f32.gmra.mxu0 %v808
      %v947 = vpop.f32.mrf.mxu0
      %v948 = vadd.f32 %v755, %v947
      %v949 = vpop.f32.mrf.mxu0
      %950 = vmatprep.mubr.f32.mxu0 0.0
      %951 = vmatmul.mubr.f32.gmra.mxu0 %v811
      %v952 = vpop.f32.mrf.mxu0
      %v953 = vadd.f32 %v760, %v952
      %v954 = vpop.f32.mrf.mxu0
      %955 = vmatprep.mubr.f32.mxu0 0.0
      %956 = vmatmul.mubr.f32.gmra.mxu0 %v814
      %v957 = vpop.f32.mrf.mxu0
      %v958 = vadd.f32 %v765, %v957
      %v959 = vpop.f32.mrf.mxu0
      %960 = vdwg.mxu0
      %v961 = vrot.slane %v452, 2
      %v962 = vrot.slane %v457, 2
      %v963 = vrot.slane %v462, 2
      %v964 = vrot.slane %v467, 2
      %v965 = vrot.slane %v472, 2
      %v966 = vrot.slane %v477, 2
      %v967 = vrot.slane %v482, 2
      %v968 = vrot.slane %v487, 2
      %v969 = vrot.slane %v492, 2
      %v970 = vrot.slane %v497, 2
      %v971 = vrot.slane %v502, 2
      %v972 = vrot.slane %v507, 2
      %v973 = vrot.slane %v512, 2
      %v974 = vrot.slane %v517, 2
      %v975 = vrot.slane %v522, 2
      %v976 = vrot.slane %v527, 2
      %vm977 = vcmp.lt.s32.totalorder %v551, 6
      %v978 = vsel %vm977, %v975, %v976
      %v979 = vsel %vm977, %v974, %v975
      %v980 = vsel %vm977, %v973, %v974
      %v981 = vsel %vm977, %v972, %v973
      %v982 = vsel %vm977, %v971, %v972
      %v983 = vsel %vm977, %v970, %v971
      %v984 = vsel %vm977, %v969, %v970
      %v985 = vsel %vm977, %v968, %v969
      %v986 = vsel %vm977, %v967, %v968
      %v987 = vsel %vm977, %v966, %v967
      %v988 = vsel %vm977, %v965, %v966
      %v989 = vsel %vm977, %v964, %v965
      %v990 = vsel %vm977, %v963, %v964
      %v991 = vsel %vm977, %v962, %v963
      %v992 = vsel %vm977, %v961, %v962
      %v993 = vsel %vm977, %v976, %v961
      %s994 = scalar_lea.vmem %s2, 64
      %v995 = vld [vmem:[%s994] sm:$0xff]
      %v996 = vld [vmem:[%s994 + $0x8] sm:$0xff]
      %v997 = vld [vmem:[%s994 + $0x10] sm:$0xff]
      %v998 = vld [vmem:[%s994 + $0x18] sm:$0xff]
      %v1000 = vsel %vm574, %v992, 0
      %v1003 = vsel %vm574, %v991, 0
      %v1006 = vsel %vm574, %v990, 0
      %v1009 = vsel %vm574, %v989, 0
      %v1012 = vsel %vm574, %v988, 0
      %v1015 = vsel %vm574, %v987, 0
      %v1018 = vsel %vm574, %v986, 0
      %v1021 = vsel %vm574, %v985, 0
      %v1024 = vsel %vm574, %v984, 0
      %v1027 = vsel %vm574, %v983, 0
      %v1030 = vsel %vm574, %v982, 0
      %v1033 = vsel %vm574, %v981, 0
      %v1036 = vsel %vm574, %v980, 0
      %v1039 = vsel %vm574, %v979, 0
      %v1042 = vsel %vm574, %v978, 0
      %v1045 = vsel %vm574, %v993, 0
      %1047 = vmatprep.subr.mxu0 0.0
      %1048 = vmatpush1.msra.mxu0 0.0
      %1049 = vmatprep.subr.mxu0 0.0
      %1050 = vmatpush1.msra.mxu0 0.0
      %1051 = vmatprep.subr.mxu0 0.0
      %1052 = vmatpush1.msra.mxu0 0.0
      %1053 = vmatprep.subr.mxu0 0.0
      %1054 = vmatpush1.msra.mxu0 0.0
      %1055 = vmatprep.subr.mxu0 0.0
      %1056 = vmatpush1.msra.mxu0 0.0
      %1057 = vmatprep.subr.mxu0 0.0
      %1058 = vmatpush1.msra.mxu0 0.0
      %1059 = vmatprep.subr.mxu0 0.0
      %1060 = vmatpush1.msra.mxu0 0.0
      %1061 = vmatprep.subr.mxu0 0.0
      %1062 = vmatpush1.msra.mxu0 0.0
      %1063 = vmatprep.subr.mxu0 0.0
      %1064 = vmatpush1.msra.mxu0 0.0
      %1065 = vmatprep.subr.mxu0 0.0
      %1066 = vmatpush1.msra.mxu0 0.0
      %1067 = vmatprep.subr.mxu0 0.0
      %1068 = vmatpush1.msra.mxu0 0.0
      %1069 = vmatprep.subr.mxu0 0.0
      %1070 = vmatpush1.msra.mxu0 0.0
      %1071 = vmatprep.subr.mxu0 0.0
      %1072 = vmatpush1.msra.mxu0 %v998
      %1073 = vmatprep.subr.mxu0 0.0
      %1074 = vmatpush1.msra.mxu0 %v997
      %1075 = vmatprep.subr.mxu0 0.0
      %1076 = vmatpush1.msra.mxu0 %v996
      %1077 = vmatprep.subr.mxu0 0.0
      %1078 = vmatpush1.msra.mxu0 %v995
      %1079 = vmatprep.subr.mxu0 0.0
      %1080 = vmatpush2.msra.mxu0 0.0
      %1081 = vmatprep.subr.mxu0 0.0
      %1082 = vmatpush2.msra.mxu0 0.0
      %1083 = vmatprep.subr.mxu0 0.0
      %1084 = vmatpush2.msra.mxu0 0.0
      %1085 = vmatprep.subr.mxu0 0.0
      %1086 = vmatpush2.msra.mxu0 0.0
      %1087 = vmatprep.subr.mxu0 0.0
      %1088 = vmatpush2.msra.mxu0 0.0
      %1089 = vmatprep.subr.mxu0 0.0
      %1090 = vmatpush2.msra.mxu0 0.0
      %1091 = vmatprep.subr.mxu0 0.0
      %1092 = vmatpush2.msra.mxu0 0.0
      %1093 = vmatprep.subr.mxu0 0.0
      %1094 = vmatpush2.msra.mxu0 0.0
      %1095 = vmatprep.subr.mxu0 0.0
      %1096 = vmatpush2.msra.mxu0 0.0
      %1097 = vmatprep.subr.mxu0 0.0
      %1098 = vmatpush2.msra.mxu0 0.0
      %1099 = vmatprep.subr.mxu0 0.0
      %1100 = vmatpush2.msra.mxu0 0.0
      %1101 = vmatprep.subr.mxu0 0.0
      %1102 = vmatpush2.msra.mxu0 0.0
      %1103 = vmatprep.subr.mxu0 0.0
      %1104 = vmatpush2.msra.mxu0 0.0
      %1105 = vmatprep.subr.mxu0 0.0
      %1106 = vmatpush2.msra.mxu0 0.0
      %1107 = vmatprep.subr.mxu0 0.0
      %1108 = vmatpush2.msra.mxu0 0.0
      %1109 = vmatprep.subr.mxu0 0.0
      %1110 = vmatpush2.msra.mxu0 0.0
      %1111 = vmatprep.mubr.f32.mxu0 0.0
      %1112 = vmatmul.mubr.f32.gmra.mxu0 %v1000
      %v1113 = vpop.f32.mrf.mxu0
      %v1114 = vadd.f32 0.0, %v1113
      %v1115 = vpop.f32.mrf.mxu0
      %1116 = vmatprep.mubr.f32.mxu0 0.0
      %1117 = vmatmul.mubr.f32.gmra.mxu0 %v1003
      %v1118 = vpop.f32.mrf.mxu0
      %v1119 = vadd.f32 0.0, %v1118
      %v1120 = vpop.f32.mrf.mxu0
      %1121 = vmatprep.mubr.f32.mxu0 0.0
      %1122 = vmatmul.mubr.f32.gmra.mxu0 %v1006
      %v1123 = vpop.f32.mrf.mxu0
      %v1124 = vadd.f32 0.0, %v1123
      %v1125 = vpop.f32.mrf.mxu0
      %1126 = vmatprep.mubr.f32.mxu0 0.0
      %1127 = vmatmul.mubr.f32.gmra.mxu0 %v1009
      %v1128 = vpop.f32.mrf.mxu0
      %v1129 = vadd.f32 0.0, %v1128
      %v1130 = vpop.f32.mrf.mxu0
      %1131 = vmatprep.mubr.f32.mxu0 0.0
      %1132 = vmatmul.mubr.f32.gmra.mxu0 %v1012
      %v1133 = vpop.f32.mrf.mxu0
      %v1134 = vadd.f32 0.0, %v1133
      %v1135 = vpop.f32.mrf.mxu0
      %1136 = vmatprep.mubr.f32.mxu0 0.0
      %1137 = vmatmul.mubr.f32.gmra.mxu0 %v1015
      %v1138 = vpop.f32.mrf.mxu0
      %v1139 = vadd.f32 0.0, %v1138
      %v1140 = vpop.f32.mrf.mxu0
      %1141 = vmatprep.mubr.f32.mxu0 0.0
      %1142 = vmatmul.mubr.f32.gmra.mxu0 %v1018
      %v1143 = vpop.f32.mrf.mxu0
      %v1144 = vadd.f32 0.0, %v1143
      %v1145 = vpop.f32.mrf.mxu0
      %1146 = vmatprep.mubr.f32.mxu0 0.0
      %1147 = vmatmul.mubr.f32.gmra.mxu0 %v1021
      %v1148 = vpop.f32.mrf.mxu0
      %v1149 = vadd.f32 0.0, %v1148
      %v1150 = vpop.f32.mrf.mxu0
      %1151 = vmatprep.mubr.f32.mxu0 0.0
      %1152 = vmatmul.mubr.f32.gmra.mxu0 %v1024
      %v1153 = vpop.f32.mrf.mxu0
      %v1154 = vadd.f32 0.0, %v1153
      %v1155 = vpop.f32.mrf.mxu0
      %1156 = vmatprep.mubr.f32.mxu0 0.0
      %1157 = vmatmul.mubr.f32.gmra.mxu0 %v1027
      %v1158 = vpop.f32.mrf.mxu0
      %v1159 = vadd.f32 0.0, %v1158
      %v1160 = vpop.f32.mrf.mxu0
      %1161 = vmatprep.mubr.f32.mxu0 0.0
      %1162 = vmatmul.mubr.f32.gmra.mxu0 %v1030
      %v1163 = vpop.f32.mrf.mxu0
      %v1164 = vadd.f32 0.0, %v1163
      %v1165 = vpop.f32.mrf.mxu0
      %1166 = vmatprep.mubr.f32.mxu0 0.0
      %1167 = vmatmul.mubr.f32.gmra.mxu0 %v1033
      %v1168 = vpop.f32.mrf.mxu0
      %v1169 = vadd.f32 0.0, %v1168
      %v1170 = vpop.f32.mrf.mxu0
      %1171 = vmatprep.mubr.f32.mxu0 0.0
      %1172 = vmatmul.mubr.f32.gmra.mxu0 %v1036
      %v1173 = vpop.f32.mrf.mxu0
      %v1174 = vadd.f32 0.0, %v1173
      %v1175 = vpop.f32.mrf.mxu0
      %1176 = vmatprep.mubr.f32.mxu0 0.0
      %1177 = vmatmul.mubr.f32.gmra.mxu0 %v1039
      %v1178 = vpop.f32.mrf.mxu0
      %v1179 = vadd.f32 0.0, %v1178
      %v1180 = vpop.f32.mrf.mxu0
      %1181 = vmatprep.mubr.f32.mxu0 0.0
      %1182 = vmatmul.mubr.f32.gmra.mxu0 %v1042
      %v1183 = vpop.f32.mrf.mxu0
      %v1184 = vadd.f32 0.0, %v1183
      %v1185 = vpop.f32.mrf.mxu0
      %1186 = vmatprep.mubr.f32.mxu0 0.0
      %1187 = vmatmul.mubr.f32.gmra.mxu0 %v1045
      %v1188 = vpop.f32.mrf.mxu0
      %v1189 = vadd.f32 0.0, %v1188
      %v1190 = vpop.f32.mrf.mxu0
      %1191 = vdwg.mxu0
      %v1192 = vadd.f32 %v883, %v1114
      %v1193 = vadd.f32 %v888, %v1119
      %v1194 = vadd.f32 %v893, %v1124
      %v1195 = vadd.f32 %v898, %v1129
      %v1196 = vadd.f32 %v903, %v1134
      %v1197 = vadd.f32 %v908, %v1139
      %v1198 = vadd.f32 %v913, %v1144
      %v1199 = vadd.f32 %v918, %v1149
      %v1200 = vadd.f32 %v923, %v1154
      %v1201 = vadd.f32 %v928, %v1159
      %v1202 = vadd.f32 %v933, %v1164
      %v1203 = vadd.f32 %v938, %v1169
      %v1204 = vadd.f32 %v943, %v1174
      %v1205 = vadd.f32 %v948, %v1179
      %v1206 = vadd.f32 %v953, %v1184
      %v1207 = vadd.f32 %v958, %v1189
      %v1208 = vrot.slane %v452, 3
      %v1209 = vrot.slane %v457, 3
      %v1210 = vrot.slane %v462, 3
      %v1211 = vrot.slane %v467, 3
      %v1212 = vrot.slane %v472, 3
      %v1213 = vrot.slane %v477, 3
      %v1214 = vrot.slane %v482, 3
      %v1215 = vrot.slane %v487, 3
      %v1216 = vrot.slane %v492, 3
      %v1217 = vrot.slane %v497, 3
      %v1218 = vrot.slane %v502, 3
      %v1219 = vrot.slane %v507, 3
      %v1220 = vrot.slane %v512, 3
      %v1221 = vrot.slane %v517, 3
      %v1222 = vrot.slane %v522, 3
      %v1223 = vrot.slane %v527, 3
      %vm1224 = vcmp.lt.s32.totalorder %v551, 5
      %v1225 = vsel %vm1224, %v1222, %v1223
      %v1226 = vsel %vm1224, %v1221, %v1222
      %v1227 = vsel %vm1224, %v1220, %v1221
      %v1228 = vsel %vm1224, %v1219, %v1220
      %v1229 = vsel %vm1224, %v1218, %v1219
      %v1230 = vsel %vm1224, %v1217, %v1218
      %v1231 = vsel %vm1224, %v1216, %v1217
      %v1232 = vsel %vm1224, %v1215, %v1216
      %v1233 = vsel %vm1224, %v1214, %v1215
      %v1234 = vsel %vm1224, %v1213, %v1214
      %v1235 = vsel %vm1224, %v1212, %v1213
      %v1236 = vsel %vm1224, %v1211, %v1212
      %v1237 = vsel %vm1224, %v1210, %v1211
      %v1238 = vsel %vm1224, %v1209, %v1210
      %v1239 = vsel %vm1224, %v1208, %v1209
      %v1240 = vsel %vm1224, %v1223, %v1208
      %s1241 = scalar_lea.vmem %s2, 96
      %v1242 = vld [vmem:[%s1241] sm:$0xff]
      %v1243 = vld [vmem:[%s1241 + $0x8] sm:$0xff]
      %v1244 = vld [vmem:[%s1241 + $0x10] sm:$0xff]
      %v1245 = vld [vmem:[%s1241 + $0x18] sm:$0xff]
      %v1247 = vsel %vm574, %v1239, 0
      %v1250 = vsel %vm574, %v1238, 0
      %v1253 = vsel %vm574, %v1237, 0
      %v1256 = vsel %vm574, %v1236, 0
      %v1259 = vsel %vm574, %v1235, 0
      %v1262 = vsel %vm574, %v1234, 0
      %v1265 = vsel %vm574, %v1233, 0
      %v1268 = vsel %vm574, %v1232, 0
      %v1271 = vsel %vm574, %v1231, 0
      %v1274 = vsel %vm574, %v1230, 0
      %v1277 = vsel %vm574, %v1229, 0
      %v1280 = vsel %vm574, %v1228, 0
      %v1283 = vsel %vm574, %v1227, 0
      %v1286 = vsel %vm574, %v1226, 0
      %v1289 = vsel %vm574, %v1225, 0
      %v1292 = vsel %vm574, %v1240, 0
      %1294 = vmatprep.subr.mxu0 0.0
      %1295 = vmatpush1.msra.mxu0 0.0
      %1296 = vmatprep.subr.mxu0 0.0
      %1297 = vmatpush1.msra.mxu0 0.0
      %1298 = vmatprep.subr.mxu0 0.0
      %1299 = vmatpush1.msra.mxu0 0.0
      %1300 = vmatprep.subr.mxu0 0.0
      %1301 = vmatpush1.msra.mxu0 0.0
      %1302 = vmatprep.subr.mxu0 0.0
      %1303 = vmatpush1.msra.mxu0 0.0
      %1304 = vmatprep.subr.mxu0 0.0
      %1305 = vmatpush1.msra.mxu0 0.0
      %1306 = vmatprep.subr.mxu0 0.0
      %1307 = vmatpush1.msra.mxu0 0.0
      %1308 = vmatprep.subr.mxu0 0.0
      %1309 = vmatpush1.msra.mxu0 0.0
      %1310 = vmatprep.subr.mxu0 0.0
      %1311 = vmatpush1.msra.mxu0 0.0
      %1312 = vmatprep.subr.mxu0 0.0
      %1313 = vmatpush1.msra.mxu0 0.0
      %1314 = vmatprep.subr.mxu0 0.0
      %1315 = vmatpush1.msra.mxu0 0.0
      %1316 = vmatprep.subr.mxu0 0.0
      %1317 = vmatpush1.msra.mxu0 0.0
      %1318 = vmatprep.subr.mxu0 0.0
      %1319 = vmatpush1.msra.mxu0 %v1245
      %1320 = vmatprep.subr.mxu0 0.0
      %1321 = vmatpush1.msra.mxu0 %v1244
      %1322 = vmatprep.subr.mxu0 0.0
      %1323 = vmatpush1.msra.mxu0 %v1243
      %1324 = vmatprep.subr.mxu0 0.0
      %1325 = vmatpush1.msra.mxu0 %v1242
      %1326 = vmatprep.subr.mxu0 0.0
      %1327 = vmatpush2.msra.mxu0 0.0
      %1328 = vmatprep.subr.mxu0 0.0
      %1329 = vmatpush2.msra.mxu0 0.0
      %1330 = vmatprep.subr.mxu0 0.0
      %1331 = vmatpush2.msra.mxu0 0.0
      %1332 = vmatprep.subr.mxu0 0.0
      %1333 = vmatpush2.msra.mxu0 0.0
      %1334 = vmatprep.subr.mxu0 0.0
      %1335 = vmatpush2.msra.mxu0 0.0
      %1336 = vmatprep.subr.mxu0 0.0
      %1337 = vmatpush2.msra.mxu0 0.0
      %1338 = vmatprep.subr.mxu0 0.0
      %1339 = vmatpush2.msra.mxu0 0.0
      %1340 = vmatprep.subr.mxu0 0.0
      %1341 = vmatpush2.msra.mxu0 0.0
      %1342 = vmatprep.subr.mxu0 0.0
      %1343 = vmatpush2.msra.mxu0 0.0
      %1344 = vmatprep.subr.mxu0 0.0
      %1345 = vmatpush2.msra.mxu0 0.0
      %1346 = vmatprep.subr.mxu0 0.0
      %1347 = vmatpush2.msra.mxu0 0.0
      %1348 = vmatprep.subr.mxu0 0.0
      %1349 = vmatpush2.msra.mxu0 0.0
      %1350 = vmatprep.subr.mxu0 0.0
      %1351 = vmatpush2.msra.mxu0 0.0
      %1352 = vmatprep.subr.mxu0 0.0
      %1353 = vmatpush2.msra.mxu0 0.0
      %1354 = vmatprep.subr.mxu0 0.0
      %1355 = vmatpush2.msra.mxu0 0.0
      %1356 = vmatprep.subr.mxu0 0.0
      %1357 = vmatpush2.msra.mxu0 0.0
      %1358 = vmatprep.mubr.f32.mxu0 0.0
      %1359 = vmatmul.mubr.f32.gmra.mxu0 %v1247
      %v1360 = vpop.f32.mrf.mxu0
      %v1361 = vadd.f32 0.0, %v1360
      %v1362 = vpop.f32.mrf.mxu0
      %1363 = vmatprep.mubr.f32.mxu0 0.0
      %1364 = vmatmul.mubr.f32.gmra.mxu0 %v1250
      %v1365 = vpop.f32.mrf.mxu0
      %v1366 = vadd.f32 0.0, %v1365
      %v1367 = vpop.f32.mrf.mxu0
      %1368 = vmatprep.mubr.f32.mxu0 0.0
      %1369 = vmatmul.mubr.f32.gmra.mxu0 %v1253
      %v1370 = vpop.f32.mrf.mxu0
      %v1371 = vadd.f32 0.0, %v1370
      %v1372 = vpop.f32.mrf.mxu0
      %1373 = vmatprep.mubr.f32.mxu0 0.0
      %1374 = vmatmul.mubr.f32.gmra.mxu0 %v1256
      %v1375 = vpop.f32.mrf.mxu0
      %v1376 = vadd.f32 0.0, %v1375
      %v1377 = vpop.f32.mrf.mxu0
      %1378 = vmatprep.mubr.f32.mxu0 0.0
      %1379 = vmatmul.mubr.f32.gmra.mxu0 %v1259
      %v1380 = vpop.f32.mrf.mxu0
      %v1381 = vadd.f32 0.0, %v1380
      %v1382 = vpop.f32.mrf.mxu0
      %1383 = vmatprep.mubr.f32.mxu0 0.0
      %1384 = vmatmul.mubr.f32.gmra.mxu0 %v1262
      %v1385 = vpop.f32.mrf.mxu0
      %v1386 = vadd.f32 0.0, %v1385
      %v1387 = vpop.f32.mrf.mxu0
      %1388 = vmatprep.mubr.f32.mxu0 0.0
      %1389 = vmatmul.mubr.f32.gmra.mxu0 %v1265
      %v1390 = vpop.f32.mrf.mxu0
      %v1391 = vadd.f32 0.0, %v1390
      %v1392 = vpop.f32.mrf.mxu0
      %1393 = vmatprep.mubr.f32.mxu0 0.0
      %1394 = vmatmul.mubr.f32.gmra.mxu0 %v1268
      %v1395 = vpop.f32.mrf.mxu0
      %v1396 = vadd.f32 0.0, %v1395
      %v1397 = vpop.f32.mrf.mxu0
      %1398 = vmatprep.mubr.f32.mxu0 0.0
      %1399 = vmatmul.mubr.f32.gmra.mxu0 %v1271
      %v1400 = vpop.f32.mrf.mxu0
      %v1401 = vadd.f32 0.0, %v1400
      %v1402 = vpop.f32.mrf.mxu0
      %1403 = vmatprep.mubr.f32.mxu0 0.0
      %1404 = vmatmul.mubr.f32.gmra.mxu0 %v1274
      %v1405 = vpop.f32.mrf.mxu0
      %v1406 = vadd.f32 0.0, %v1405
      %v1407 = vpop.f32.mrf.mxu0
      %1408 = vmatprep.mubr.f32.mxu0 0.0
      %1409 = vmatmul.mubr.f32.gmra.mxu0 %v1277
      %v1410 = vpop.f32.mrf.mxu0
      %v1411 = vadd.f32 0.0, %v1410
      %v1412 = vpop.f32.mrf.mxu0
      %1413 = vmatprep.mubr.f32.mxu0 0.0
      %1414 = vmatmul.mubr.f32.gmra.mxu0 %v1280
      %v1415 = vpop.f32.mrf.mxu0
      %v1416 = vadd.f32 0.0, %v1415
      %v1417 = vpop.f32.mrf.mxu0
      %1418 = vmatprep.mubr.f32.mxu0 0.0
      %1419 = vmatmul.mubr.f32.gmra.mxu0 %v1283
      %v1420 = vpop.f32.mrf.mxu0
      %v1421 = vadd.f32 0.0, %v1420
      %v1422 = vpop.f32.mrf.mxu0
      %1423 = vmatprep.mubr.f32.mxu0 0.0
      %1424 = vmatmul.mubr.f32.gmra.mxu0 %v1286
      %v1425 = vpop.f32.mrf.mxu0
      %v1426 = vadd.f32 0.0, %v1425
      %v1427 = vpop.f32.mrf.mxu0
      %1428 = vmatprep.mubr.f32.mxu0 0.0
      %1429 = vmatmul.mubr.f32.gmra.mxu0 %v1289
      %v1430 = vpop.f32.mrf.mxu0
      %v1431 = vadd.f32 0.0, %v1430
      %v1432 = vpop.f32.mrf.mxu0
      %1433 = vmatprep.mubr.f32.mxu0 0.0
      %1434 = vmatmul.mubr.f32.gmra.mxu0 %v1292
      %v1435 = vpop.f32.mrf.mxu0
      %v1436 = vadd.f32 0.0, %v1435
      %v1437 = vpop.f32.mrf.mxu0
      %1438 = vdwg.mxu0
      %v1439 = vadd.f32 %v1192, %v1361
      %v1440 = vadd.f32 %v1193, %v1366
      %v1441 = vadd.f32 %v1194, %v1371
      %v1442 = vadd.f32 %v1195, %v1376
      %v1443 = vadd.f32 %v1196, %v1381
      %v1444 = vadd.f32 %v1197, %v1386
      %v1445 = vadd.f32 %v1198, %v1391
      %v1446 = vadd.f32 %v1199, %v1396
      %v1447 = vadd.f32 %v1200, %v1401
      %v1448 = vadd.f32 %v1201, %v1406
      %v1449 = vadd.f32 %v1202, %v1411
      %v1450 = vadd.f32 %v1203, %v1416
      %v1451 = vadd.f32 %v1204, %v1421
      %v1452 = vadd.f32 %v1205, %v1426
      %v1453 = vadd.f32 %v1206, %v1431
      %v1454 = vadd.f32 %v1207, %v1436
      %v1455 = vld [vmem:[%s4] sm:$0x3]
      %v1456 = vlaneseq
      %v1457 = vshrl.u32 %v1456, 7
      %v1458 = vsub.s32 0, %v1457
      %v1459 = vrot.slane %v1455, %v1458
      %v1460 = vadd.f32 %v1439, %v1459
      %v1461 = vadd.f32 %v1440, %v1459
      %v1462 = vadd.f32 %v1441, %v1459
      %v1463 = vadd.f32 %v1442, %v1459
      %v1464 = vadd.f32 %v1443, %v1459
      %v1465 = vadd.f32 %v1444, %v1459
      %v1466 = vadd.f32 %v1445, %v1459
      %v1467 = vadd.f32 %v1446, %v1459
      %v1468 = vadd.f32 %v1447, %v1459
      %v1469 = vadd.f32 %v1448, %v1459
      %v1470 = vadd.f32 %v1449, %v1459
      %v1471 = vadd.f32 %v1450, %v1459
      %v1472 = vadd.f32 %v1451, %v1459
      %v1473 = vadd.f32 %v1452, %v1459
      %v1474 = vadd.f32 %v1453, %v1459
      %v1475 = vadd.f32 %v1454, %v1459
      %v1476 = vmax.f32 %v1460, 0.0
      %v1477 = vmax.f32 %v1461, 0.0
      %v1478 = vmax.f32 %v1462, 0.0
      %v1479 = vmax.f32 %v1463, 0.0
      %v1480 = vmax.f32 %v1464, 0.0
      %v1481 = vmax.f32 %v1465, 0.0
      %v1482 = vmax.f32 %v1466, 0.0
      %v1483 = vmax.f32 %v1467, 0.0
      %v1484 = vmax.f32 %v1468, 0.0
      %v1485 = vmax.f32 %v1469, 0.0
      %v1486 = vmax.f32 %v1470, 0.0
      %v1487 = vmax.f32 %v1471, 0.0
      %v1488 = vmax.f32 %v1472, 0.0
      %v1489 = vmax.f32 %v1473, 0.0
      %v1490 = vmax.f32 %v1474, 0.0
      %v1491 = vmax.f32 %v1475, 0.0
      %v1492 = vld [vmem:[%s5] sm:$0xff]
      %v1493 = vld [vmem:[%s5 + $0x8] sm:$0xff]
      %v1494 = vld [vmem:[%s5 + $0x10] sm:$0xff]
      %v1495 = vld [vmem:[%s5 + $0x18] sm:$0xff]
      %v1496 = vld [vmem:[%s5 + $0x20] sm:$0xff]
      %v1497 = vld [vmem:[%s5 + $0x28] sm:$0xff]
      %v1498 = vld [vmem:[%s5 + $0x30] sm:$0xff]
      %v1499 = vld [vmem:[%s5 + $0x38] sm:$0xff]
      %v1500 = vld [vmem:[%s5 + $0x40] sm:$0xff]
      %v1501 = vld [vmem:[%s5 + $0x48] sm:$0xff]
      %v1502 = vld [vmem:[%s5 + $0x50] sm:$0xff]
      %v1503 = vld [vmem:[%s5 + $0x58] sm:$0xff]
      %v1504 = vld [vmem:[%s5 + $0x60] sm:$0xff]
      %v1505 = vld [vmem:[%s5 + $0x68] sm:$0xff]
      %v1506 = vld [vmem:[%s5 + $0x70] sm:$0xff]
      %v1507 = vld [vmem:[%s5 + $0x78] sm:$0xff]
      %v1508 = vmul.f32 %v1476, %v1492
      %v1509 = vmul.f32 %v1477, %v1493
      %v1510 = vmul.f32 %v1478, %v1494
      %v1511 = vmul.f32 %v1479, %v1495
      %v1512 = vmul.f32 %v1480, %v1496
      %v1513 = vmul.f32 %v1481, %v1497
      %v1514 = vmul.f32 %v1482, %v1498
      %v1515 = vmul.f32 %v1483, %v1499
      %v1516 = vmul.f32 %v1484, %v1500
      %v1517 = vmul.f32 %v1485, %v1501
      %v1518 = vmul.f32 %v1486, %v1502
      %v1519 = vmul.f32 %v1487, %v1503
      %v1520 = vmul.f32 %v1488, %v1504
      %v1521 = vmul.f32 %v1489, %v1505
      %v1522 = vmul.f32 %v1490, %v1506
      %v1523 = vmul.f32 %v1491, %v1507
      %v1524 = vrot.slane %v1508, 4
      %v1525 = vmax.f32 %v1508, %v1524
      %v1526 = vrot.slane %v1525, 2
      %v1527 = vmax.f32 %v1525, %v1526
      %v1528 = vrot.slane %v1527, 1
      %v1529 = vmax.f32 %v1527, %v1528
      %v1530 = vrot.slane %v1509, 4
      %v1531 = vmax.f32 %v1509, %v1530
      %v1532 = vrot.slane %v1531, 2
      %v1533 = vmax.f32 %v1531, %v1532
      %v1534 = vrot.slane %v1533, 1
      %v1535 = vmax.f32 %v1533, %v1534
      %v1536 = vrot.slane %v1510, 4
      %v1537 = vmax.f32 %v1510, %v1536
      %v1538 = vrot.slane %v1537, 2
      %v1539 = vmax.f32 %v1537, %v1538
      %v1540 = vrot.slane %v1539, 1
      %v1541 = vmax.f32 %v1539, %v1540
      %v1542 = vrot.slane %v1511, 4
      %v1543 = vmax.f32 %v1511, %v1542
      %v1544 = vrot.slane %v1543, 2
      %v1545 = vmax.f32 %v1543, %v1544
      %v1546 = vrot.slane %v1545, 1
      %v1547 = vmax.f32 %v1545, %v1546
      %v1548 = vrot.slane %v1512, 4
      %v1549 = vmax.f32 %v1512, %v1548
      %v1550 = vrot.slane %v1549, 2
      %v1551 = vmax.f32 %v1549, %v1550
      %v1552 = vrot.slane %v1551, 1
      %v1553 = vmax.f32 %v1551, %v1552
      %v1554 = vrot.slane %v1513, 4
      %v1555 = vmax.f32 %v1513, %v1554
      %v1556 = vrot.slane %v1555, 2
      %v1557 = vmax.f32 %v1555, %v1556
      %v1558 = vrot.slane %v1557, 1
      %v1559 = vmax.f32 %v1557, %v1558
      %v1560 = vrot.slane %v1514, 4
      %v1561 = vmax.f32 %v1514, %v1560
      %v1562 = vrot.slane %v1561, 2
      %v1563 = vmax.f32 %v1561, %v1562
      %v1564 = vrot.slane %v1563, 1
      %v1565 = vmax.f32 %v1563, %v1564
      %v1566 = vrot.slane %v1515, 4
      %v1567 = vmax.f32 %v1515, %v1566
      %v1568 = vrot.slane %v1567, 2
      %v1569 = vmax.f32 %v1567, %v1568
      %v1570 = vrot.slane %v1569, 1
      %v1571 = vmax.f32 %v1569, %v1570
      %v1572 = vrot.slane %v1516, 4
      %v1573 = vmax.f32 %v1516, %v1572
      %v1574 = vrot.slane %v1573, 2
      %v1575 = vmax.f32 %v1573, %v1574
      %v1576 = vrot.slane %v1575, 1
      %v1577 = vmax.f32 %v1575, %v1576
      %v1578 = vrot.slane %v1517, 4
      %v1579 = vmax.f32 %v1517, %v1578
      %v1580 = vrot.slane %v1579, 2
      %v1581 = vmax.f32 %v1579, %v1580
      %v1582 = vrot.slane %v1581, 1
      %v1583 = vmax.f32 %v1581, %v1582
      %v1584 = vrot.slane %v1518, 4
      %v1585 = vmax.f32 %v1518, %v1584
      %v1586 = vrot.slane %v1585, 2
      %v1587 = vmax.f32 %v1585, %v1586
      %v1588 = vrot.slane %v1587, 1
      %v1589 = vmax.f32 %v1587, %v1588
      %v1590 = vrot.slane %v1519, 4
      %v1591 = vmax.f32 %v1519, %v1590
      %v1592 = vrot.slane %v1591, 2
      %v1593 = vmax.f32 %v1591, %v1592
      %v1594 = vrot.slane %v1593, 1
      %v1595 = vmax.f32 %v1593, %v1594
      %v1596 = vrot.slane %v1520, 4
      %v1597 = vmax.f32 %v1520, %v1596
      %v1598 = vrot.slane %v1597, 2
      %v1599 = vmax.f32 %v1597, %v1598
      %v1600 = vrot.slane %v1599, 1
      %v1601 = vmax.f32 %v1599, %v1600
      %v1602 = vrot.slane %v1521, 4
      %v1603 = vmax.f32 %v1521, %v1602
      %v1604 = vrot.slane %v1603, 2
      %v1605 = vmax.f32 %v1603, %v1604
      %v1606 = vrot.slane %v1605, 1
      %v1607 = vmax.f32 %v1605, %v1606
      %v1608 = vrot.slane %v1522, 4
      %v1609 = vmax.f32 %v1522, %v1608
      %v1610 = vrot.slane %v1609, 2
      %v1611 = vmax.f32 %v1609, %v1610
      %v1612 = vrot.slane %v1611, 1
      %v1613 = vmax.f32 %v1611, %v1612
      %v1614 = vrot.slane %v1523, 4
      %v1615 = vmax.f32 %v1523, %v1614
      %v1616 = vrot.slane %v1615, 2
      %v1617 = vmax.f32 %v1615, %v1616
      %v1618 = vrot.slane %v1617, 1
      %v1619 = vmax.f32 %v1617, %v1618
      %v1620 = vld [vmem:[%s3] sm:$0xff]
      %v1621 = vld [vmem:[%s3 + $0x8] sm:$0xff]
      %v1622 = vld [vmem:[%s3 + $0x10] sm:$0xff]
      %v1623 = vld [vmem:[%s3 + $0x18] sm:$0xff]
      %v1624 = vld [vmem:[%s3 + $0x20] sm:$0xff]
      %v1625 = vld [vmem:[%s3 + $0x28] sm:$0xff]
      %v1626 = vld [vmem:[%s3 + $0x30] sm:$0xff]
      %v1627 = vld [vmem:[%s3 + $0x38] sm:$0xff]
      %v1628 = vld [vmem:[%s3 + $0x40] sm:$0xff]
      %v1629 = vld [vmem:[%s3 + $0x48] sm:$0xff]
      %v1630 = vld [vmem:[%s3 + $0x50] sm:$0xff]
      %v1631 = vld [vmem:[%s3 + $0x58] sm:$0xff]
      %v1632 = vld [vmem:[%s3 + $0x60] sm:$0xff]
      %v1633 = vld [vmem:[%s3 + $0x68] sm:$0xff]
      %v1634 = vld [vmem:[%s3 + $0x70] sm:$0xff]
      %v1635 = vld [vmem:[%s3 + $0x78] sm:$0xff]
      %v1636 = vlaneseq
      %v1637 = vshrl.u32 %v1636, 7
      %v1638 = vsub.s32 1, %v1637
      %v1639 = vrot.slane %v1455, %v1638
      %vm1656 = vcmask 1041409
      %v1657 = vsel %vm1656, %v1535, %v1529
      %vm1658 = vcmask 1042434
      %v1659 = vsel %vm1658, %v1541, %v1657
      %vm1660 = vcmask 1043459
      %v1661 = vsel %vm1660, %v1547, %v1659
      %vm1662 = vcmask 1044484
      %v1663 = vsel %vm1662, %v1553, %v1661
      %vm1664 = vcmask 1045509
      %v1665 = vsel %vm1664, %v1559, %v1663
      %vm1666 = vcmask 1046534
      %v1667 = vsel %vm1666, %v1565, %v1665
      %vm1668 = vcmask 1047559
      %v1669 = vsel %vm1668, %v1571, %v1667
      %v1670 = vsel %vm1656, %v1583, %v1577
      %v1671 = vsel %vm1658, %v1589, %v1670
      %v1672 = vsel %vm1660, %v1595, %v1671
      %v1673 = vsel %vm1662, %v1601, %v1672
      %v1674 = vsel %vm1664, %v1607, %v1673
      %v1675 = vsel %vm1666, %v1613, %v1674
      %v1676 = vsel %vm1668, %v1619, %v1675
      %1679 = vmatprep.subr.mxu0 0.0
      %1680 = vmatpush1.msra.mxu0 %v1635
      %1681 = vmatprep.subr.mxu0 0.0
      %1682 = vmatpush1.msra.mxu0 %v1634
      %1683 = vmatprep.subr.mxu0 0.0
      %1684 = vmatpush1.msra.mxu0 %v1633
      %1685 = vmatprep.subr.mxu0 0.0
      %1686 = vmatpush1.msra.mxu0 %v1632
      %1687 = vmatprep.subr.mxu0 0.0
      %1688 = vmatpush1.msra.mxu0 %v1631
      %1689 = vmatprep.subr.mxu0 0.0
      %1690 = vmatpush1.msra.mxu0 %v1630
      %1691 = vmatprep.subr.mxu0 0.0
      %1692 = vmatpush1.msra.mxu0 %v1629
      %1693 = vmatprep.subr.mxu0 0.0
      %1694 = vmatpush1.msra.mxu0 %v1628
      %1695 = vmatprep.subr.mxu0 0.0
      %1696 = vmatpush1.msra.mxu0 %v1627
      %1697 = vmatprep.subr.mxu0 0.0
      %1698 = vmatpush1.msra.mxu0 %v1626
      %1699 = vmatprep.subr.mxu0 0.0
      %1700 = vmatpush1.msra.mxu0 %v1625
      %1701 = vmatprep.subr.mxu0 0.0
      %1702 = vmatpush1.msra.mxu0 %v1624
      %1703 = vmatprep.subr.mxu0 0.0
      %1704 = vmatpush1.msra.mxu0 %v1623
      %1705 = vmatprep.subr.mxu0 0.0
      %1706 = vmatpush1.msra.mxu0 %v1622
      %1707 = vmatprep.subr.mxu0 0.0
      %1708 = vmatpush1.msra.mxu0 %v1621
      %1709 = vmatprep.subr.mxu0 0.0
      %1710 = vmatpush1.msra.mxu0 %v1620
      %1711 = vmatprep.subr.mxu0 0.0
      %1712 = vmatpush2.msra.mxu0 0.0
      %1713 = vmatprep.subr.mxu0 0.0
      %1714 = vmatpush2.msra.mxu0 0.0
      %1715 = vmatprep.subr.mxu0 0.0
      %1716 = vmatpush2.msra.mxu0 0.0
      %1717 = vmatprep.subr.mxu0 0.0
      %1718 = vmatpush2.msra.mxu0 0.0
      %1719 = vmatprep.subr.mxu0 0.0
      %1720 = vmatpush2.msra.mxu0 0.0
      %1721 = vmatprep.subr.mxu0 0.0
      %1722 = vmatpush2.msra.mxu0 0.0
      %1723 = vmatprep.subr.mxu0 0.0
      %1724 = vmatpush2.msra.mxu0 0.0
      %1725 = vmatprep.subr.mxu0 0.0
      %1726 = vmatpush2.msra.mxu0 0.0
      %1727 = vmatprep.subr.mxu0 0.0
      %1728 = vmatpush2.msra.mxu0 0.0
      %1729 = vmatprep.subr.mxu0 0.0
      %1730 = vmatpush2.msra.mxu0 0.0
      %1731 = vmatprep.subr.mxu0 0.0
      %1732 = vmatpush2.msra.mxu0 0.0
      %1733 = vmatprep.subr.mxu0 0.0
      %1734 = vmatpush2.msra.mxu0 0.0
      %1735 = vmatprep.subr.mxu0 0.0
      %1736 = vmatpush2.msra.mxu0 0.0
      %1737 = vmatprep.subr.mxu0 0.0
      %1738 = vmatpush2.msra.mxu0 0.0
      %1739 = vmatprep.subr.mxu0 0.0
      %1740 = vmatpush2.msra.mxu0 0.0
      %1741 = vmatprep.subr.mxu0 0.0
      %1742 = vmatpush2.msra.mxu0 0.0
      %1743 = vmatprep.mubr.f32.mxu0 0.0
      %1744 = vmatmul.mubr.f32.gmra.mxu0 %v1669
      %v1745 = vpop.f32.mrf.mxu0
      %v1746 = vadd.f32 %v1639, %v1745
      %v1747 = vpop.f32.mrf.mxu0
      %1748 = vmatprep.mubr.f32.mxu0 0.0
      %1749 = vmatmul.mubr.f32.gmra.mxu0 %v1676
      %v1750 = vpop.f32.mrf.mxu0
      %v1751 = vadd.f32 %v1639, %v1750
      %v1752 = vpop.f32.mrf.mxu0
      %1753 = vdwg.mxu0
      %1754 = vmax.xlane.f32.xlu0 %v1746
      %v1755 = vpop.xlane.xlu0 %1754
      %1756 = vmax.xlane.f32.xlu0 %v1751
      %v1757 = vpop.xlane.xlu0 %1756
      %v1758 = vsub.f32 %v1746, %v1755
      %v1759 = vsub.f32 %v1751, %v1757
      %v1760 = vmul.f32 %v1758, 1.442695
      %v1761 = vpow.pop %v1760
      %v1762 = vmul.f32 %v1759, 1.442695
      %v1763 = vpow.pop %v1762
      %1764 = vadd.xlane.f32.xlu0 %v1761
      %v1765 = vpop.xlane.xlu0 %1764
      %1766 = vadd.xlane.f32.xlu0 %v1763
      %v1767 = vpop.xlane.xlu0 %1766
      %v1768 = vrcp.pop %v1765
      %v1769 = vrcp.pop %v1767
      %v1770 = vmul.f32 %v1761, %v1768
      %v1771 = vmul.f32 %v1763, %v1769
      %1772 = vst [vmem:[%s253] sm:$0xff] %v1770
      %1773 = vst [vmem:[%s253 + $0x8] sm:$0xff] %v1771
      %s1774 = smul.u32 2, %s17
      %p1775 = scmp.lt.s32.totalorder %s1774, 3
      %s1776 = scalar_select %p1775, %s1774, 3
      %s1777 = smul.addr %s1776, 8
      %s1778 = scalar_lea.vmem %s6, %s1777
      // Predicated region
      $region45: #{cnn_forward.1} parent=43 // pred_check
        %p1779 = pneg %p166
      $region46: #{cnn_forward.1} parent=43 // pred_check_branch
        %1781 = sbr.rel (%p1779) target = $region48
      $region47: #{cnn_forward.1} parent=43 // pred_region
        %s1782 = smul.u32 2, %s17
      $region48: #{cnn_forward.1} parent=43 // pred_fallthru
        _
    $region44: #{cnn_forward.1} parent=5 // pred_fallthru
      _
    %p1783 = scmp.le.s32.totalorder 2, %s12
    // Predicated region
    $region49: #{cnn_forward.1} parent=5 // pred_check
      %p1784 = pneg %p1783
    $region50: #{cnn_forward.1} parent=5 // pred_check_branch
      %1786 = sbr.rel (%p1784) target = $region52
    $region51: #{cnn_forward.1} parent=5 // pred_region
      %s1787 = ssub.s32 %s12, 2
      // Predicated region
      $region53: #{cnn_forward.1} parent=51 // pred_check
        %p1788 = pneg %p172
      $region54: #{cnn_forward.1} parent=51 // pred_check_branch
        %1790 = sbr.rel (%p1788) target = $region56
      $region55: #{cnn_forward.1} parent=51 // pred_region
        %s1791 = smul.u32 2, %s18
        %p1792 = scmp.lt.s32.totalorder %s1791, 3
        %s1793 = scalar_select %p1792, %s1791, 3
        %s1794 = smul.addr %s1793, 8
        %s1795 = scalar_lea.vmem %s6, %s1794
      $region56: #{cnn_forward.1} parent=51 // pred_fallthru
        _
    $region52: #{cnn_forward.1} parent=5 // pred_fallthru
      _
  $region6: #{cnn_forward.1} parent=0 // loop_footer
    %s16 = sadd.s32 1, %s12
  $region7: #{cnn_forward.1} parent=0 // loop_footer_branch
    %11 = sbr.rel target = $region3
  $region8: #{cnn_forward.1} parent=0 // loop_exit
    _

</llo_original>
